<compile_context>
chip_gen: v7x
topology: tpu7x:2x2x1
jax: 0.10.0
libtpu: 0.0.40
codegen_flags: <defaults>
</compile_context>

<pallas_src>
import jax
import jax.numpy as jnp
from jax.experimental import pallas as pl
from jax.experimental.pallas import tpu as pltpu

# ---- shapes (small but consistent with the module) -------------------------
B, S, H = 2, 16, 768      # batch, encoder seq len, BERT hidden size (768 fixed)
T = 8                     # decoder / labels seq length (labels.size(1))
D1, D2 = 512, 256         # decoder hidden dims: Linear(768,512), Linear(512,256)
V = 128                   # len(tokenizer) -> synthetic vocab size (lane-dense)
PAD_ID = 0                # tokenizer.pad_token_id (CrossEntropyLoss ignore_index)


def summarizer_kernel(enc_ref, labels_ref,
                      w1_ref, b1_ref, w2_ref, b2_ref, w3_ref, b3_ref,
                      logits_ref, loss_ref):
    enc = enc_ref[...]                                    # (B, S, H) f32
    # pooled = encoded.mean(dim=1)  -> sum + single scalar scale
    pooled = jnp.sum(enc, axis=1) * jnp.float32(1.0 / S)  # (B, H) f32

    # decoder: Linear -> ReLU -> (Dropout=id) -> Linear -> ReLU -> (Dropout=id) -> Linear
    # bf16 operands on the MXU, f32 accumulation, f32 bias / activations on the VPU.
    h1 = jnp.dot(pooled.astype(jnp.bfloat16), w1_ref[...],
                 preferred_element_type=jnp.float32) + b1_ref[...]
    h1 = jnp.maximum(h1, 0.0)                             # (B, D1) f32
    h2 = jnp.dot(h1.astype(jnp.bfloat16), w2_ref[...],
                 preferred_element_type=jnp.float32) + b2_ref[...]
    h2 = jnp.maximum(h2, 0.0)                             # (B, D2) f32
    logits_b = jnp.dot(h2.astype(jnp.bfloat16), w3_ref[...],
                       preferred_element_type=jnp.float32) + b3_ref[...]  # (B, V) f32

    # expanded logits = pooled row repeated T times -> sublane broadcast on write
    logits_ref[...] = jnp.broadcast_to(logits_b[:, None, :], (B, T, V))

    # CrossEntropyLoss(ignore_index=PAD_ID, reduction='mean') over (B*T, V) vs (B*T,)
    # All T rows per batch share the same logits, so gather log-probs via
    # per-batch one-hot *counts* instead of expanding logp to (B*T, V).
    labels = labels_ref[...]                              # (B*T, 1) int32
    m = jnp.max(logits_b, axis=-1, keepdims=True)         # (B, 1)
    lse = jnp.log(jnp.sum(jnp.exp(logits_b - m), axis=-1, keepdims=True)) + m
    logp = logits_b - lse                                 # (B, V) log_softmax

    valid = (labels != PAD_ID).astype(jnp.float32)        # (B*T, 1)
    onehot = jax.lax.broadcasted_iota(jnp.int32, (B * T, V), 1) == labels  # (B*T, V)
    masked = jnp.where(onehot, valid, 0.0)                # (B*T, V) f32
    # counts[b, v] = #{t : labels[b, t] == v and labels[b, t] != PAD}
    counts = jnp.sum(masked.reshape(B, T, V), axis=1)     # (B, V)

    picked_sum = jnp.sum(logp * counts)                   # scalar
    denom = jnp.maximum(jnp.sum(valid), 1.0)
    loss_ref[...] = jnp.reshape(-picked_sum / denom, (1, 1))


def _full_spec(shape):
    # whole array in VMEM, single grid point
    return pl.BlockSpec(shape, lambda i: (0,) * len(shape))


@jax.jit
def summarize_forward(encoded, labels, w1, b1, w2, b2, w3, b3):
    # layout plumbing in the wrapper: lane-friendly labels, bf16 weights
    labels_r = labels.reshape(B * T, 1).astype(jnp.int32)
    w1b = w1.astype(jnp.bfloat16)
    w2b = w2.astype(jnp.bfloat16)
    w3b = w3.astype(jnp.bfloat16)

    out_shapes = (
        jax.ShapeDtypeStruct((B, T, V), jnp.float32),     # logits
        jax.ShapeDtypeStruct((1, 1), jnp.float32),        # loss
    )
    logits, loss = pl.pallas_call(
        summarizer_kernel,
        out_shape=out_shapes,
        grid=(1,),
        in_specs=[
            _full_spec((B, S, H)),       # encoder last_hidden_state (f32)
            _full_spec((B * T, 1)),      # labels (int32, pre-reshaped)
            _full_spec((H, D1)), _full_spec((1, D1)),
            _full_spec((D1, D2)), _full_spec((1, D2)),
            _full_spec((D2, V)), _full_spec((1, V)),
        ],
        out_specs=[
            _full_spec((B, T, V)),
            _full_spec((1, 1)),
        ],
        compiler_params=pltpu.CompilerParams(
            dimension_semantics=("arbitrary",)),
    )(encoded, labels_r, w1b, b1, w2b, b2, w3b, b3)
    return {"loss": loss[0, 0], "logits": logits}


def init_params(key):
    k1, k2, k3 = jax.random.split(key, 3)
    # deterministic, roughly Kaiming-scaled init; weights in (in, out) layout
    w1 = jax.random.normal(k1, (H, D1), jnp.float32) * (2.0 / H) ** 0.5
    b1 = jnp.zeros((1, D1), jnp.float32)
    w2 = jax.random.normal(k2, (D1, D2), jnp.float32) * (2.0 / D1) ** 0.5
    b2 = jnp.zeros((1, D2), jnp.float32)
    w3 = jax.random.normal(k3, (D2, V), jnp.float32) * (2.0 / D2) ** 0.5
    b3 = jnp.zeros((1, V), jnp.float32)
    return w1, b1, w2, b2, w3, b3


if __name__ == "__main__":
    root = jax.random.PRNGKey(0)
    k_enc, k_lab, k_par = jax.random.split(root, 3)

    # synthetic BERT last_hidden_state and labels (some PAD_ID tokens appear)
    encoded = jax.random.normal(k_enc, (B, S, H), jnp.float32)
    labels = jax.random.randint(k_lab, (B, T), 0, V, dtype=jnp.int32)
    params = init_params(k_par)

    out = summarize_forward(encoded, labels, *params)
    jax.block_until_ready(out)

    assert out["logits"].shape == (B, T, V)
    assert out["loss"].shape == ()
    print("KERNEL_OK")
</pallas_src>

<mosaic_0001>
module attributes {stable_mosaic.version = 11 : i64} {
  func.func @summarizer_kernel(%arg0: i32, %arg1: memref<2x16x768xf32, #tpu.memory_space<vmem>>, %arg2: memref<16x1xi32, #tpu.memory_space<vmem>>, %arg3: memref<768x512xbf16, #tpu.memory_space<vmem>>, %arg4: memref<1x512xf32, #tpu.memory_space<vmem>>, %arg5: memref<512x256xbf16, #tpu.memory_space<vmem>>, %arg6: memref<1x256xf32, #tpu.memory_space<vmem>>, %arg7: memref<256x128xbf16, #tpu.memory_space<vmem>>, %arg8: memref<1x128xf32, #tpu.memory_space<vmem>>, %arg9: memref<2x8x128xf32, #tpu.memory_space<vmem>>, %arg10: memref<1x1xf32, #tpu.memory_space<vmem>>) attributes {dimension_semantics = [#tpu.dimension_semantics<arbitrary>], iteration_bounds = array<i64: 1>, scalar_prefetch = 0 : i64, scratch_operands = 0 : i64, tpu.core_type = #tpu.core_type<tc>, window_params = [{pipeline_mode = #tpu.pipeline_mode<synchronous>, transform_indices = @transform_0, window_bounds = array<i64: 2, 16, 768>}, {pipeline_mode = #tpu.pipeline_mode<synchronous>, transform_indices = @transform_1, window_bounds = array<i64: 16, 1>}, {pipeline_mode = #tpu.pipeline_mode<synchronous>, transform_indices = @transform_2, window_bounds = array<i64: 768, 512>}, {pipeline_mode = #tpu.pipeline_mode<synchronous>, transform_indices = @transform_3, window_bounds = array<i64: 1, 512>}, {pipeline_mode = #tpu.pipeline_mode<synchronous>, transform_indices = @transform_4, window_bounds = array<i64: 512, 256>}, {pipeline_mode = #tpu.pipeline_mode<synchronous>, transform_indices = @transform_5, window_bounds = array<i64: 1, 256>}, {pipeline_mode = #tpu.pipeline_mode<synchronous>, transform_indices = @transform_6, window_bounds = array<i64: 256, 128>}, {pipeline_mode = #tpu.pipeline_mode<synchronous>, transform_indices = @transform_7, window_bounds = array<i64: 1, 128>}, {pipeline_mode = #tpu.pipeline_mode<synchronous>, transform_indices = @transform_8, window_bounds = array<i64: 2, 8, 128>}, {pipeline_mode = #tpu.pipeline_mode<synchronous>, transform_indices = @transform_9, window_bounds = array<i64: 1, 1>}]} {
    %c0 = arith.constant 0 : index
    %c0_0 = arith.constant 0 : index
    %c0_1 = arith.constant 0 : index
    %0 = vector.load %arg1[%c0, %c0_0, %c0_1] : memref<2x16x768xf32, #tpu.memory_space<vmem>>, vector<2x16x768xf32>
    %cst = arith.constant dense<0.000000e+00> : vector<2x768xf32>
    %1 = vector.multi_reduction <add>, %0, %cst [1] : vector<2x16x768xf32> to vector<2x768xf32>
    %cst_2 = arith.constant 6.250000e-02 : f32
    %2 = vector.broadcast %cst_2 : f32 to vector<2x768xf32>
    %3 = arith.mulf %1, %2 : vector<2x768xf32>
    %4 = arith.truncf %3 : vector<2x768xf32> to vector<2x768xbf16>
    %c0_3 = arith.constant 0 : index
    %c0_4 = arith.constant 0 : index
    %5 = vector.load %arg3[%c0_3, %c0_4] : memref<768x512xbf16, #tpu.memory_space<vmem>>, vector<768x512xbf16>
    %cst_5 = arith.constant dense<0.000000e+00> : vector<2x512xf32>
    %6 = tpu.matmul %4, %5, %cst_5 {dimension_numbers = #tpu.dot_dimension_numbers<[1], [0], [0], [1], [0, 0, 1, 1], [], []>} : vector<2x768xbf16>, vector<768x512xbf16>, vector<2x512xf32> -> vector<2x512xf32>
    %c0_6 = arith.constant 0 : index
    %c0_7 = arith.constant 0 : index
    %7 = vector.load %arg4[%c0_6, %c0_7] : memref<1x512xf32, #tpu.memory_space<vmem>>, vector<1x512xf32>
    %8 = vector.broadcast %7 : vector<1x512xf32> to vector<2x512xf32>
    %9 = arith.addf %6, %8 : vector<2x512xf32>
    %cst_8 = arith.constant 0.000000e+00 : f32
    %10 = vector.broadcast %cst_8 : f32 to vector<2x512xf32>
    %11 = arith.maximumf %9, %10 : vector<2x512xf32>
    %12 = arith.truncf %11 : vector<2x512xf32> to vector<2x512xbf16>
    %c0_9 = arith.constant 0 : index
    %c0_10 = arith.constant 0 : index
    %13 = vector.load %arg5[%c0_9, %c0_10] : memref<512x256xbf16, #tpu.memory_space<vmem>>, vector<512x256xbf16>
    %cst_11 = arith.constant dense<0.000000e+00> : vector<2x256xf32>
    %14 = tpu.matmul %12, %13, %cst_11 {dimension_numbers = #tpu.dot_dimension_numbers<[1], [0], [0], [1], [0, 0, 1, 1], [], []>} : vector<2x512xbf16>, vector<512x256xbf16>, vector<2x256xf32> -> vector<2x256xf32>
    %c0_12 = arith.constant 0 : index
    %c0_13 = arith.constant 0 : index
    %15 = vector.load %arg6[%c0_12, %c0_13] : memref<1x256xf32, #tpu.memory_space<vmem>>, vector<1x256xf32>
    %16 = vector.broadcast %15 : vector<1x256xf32> to vector<2x256xf32>
    %17 = arith.addf %14, %16 : vector<2x256xf32>
    %cst_14 = arith.constant 0.000000e+00 : f32
    %18 = vector.broadcast %cst_14 : f32 to vector<2x256xf32>
    %19 = arith.maximumf %17, %18 : vector<2x256xf32>
    %20 = arith.truncf %19 : vector<2x256xf32> to vector<2x256xbf16>
    %c0_15 = arith.constant 0 : index
    %c0_16 = arith.constant 0 : index
    %21 = vector.load %arg7[%c0_15, %c0_16] : memref<256x128xbf16, #tpu.memory_space<vmem>>, vector<256x128xbf16>
    %cst_17 = arith.constant dense<0.000000e+00> : vector<2x128xf32>
    %22 = tpu.matmul %20, %21, %cst_17 {dimension_numbers = #tpu.dot_dimension_numbers<[1], [0], [0], [1], [0, 0, 1, 1], [], []>} : vector<2x256xbf16>, vector<256x128xbf16>, vector<2x128xf32> -> vector<2x128xf32>
    %c0_18 = arith.constant 0 : index
    %c0_19 = arith.constant 0 : index
    %23 = vector.load %arg8[%c0_18, %c0_19] : memref<1x128xf32, #tpu.memory_space<vmem>>, vector<1x128xf32>
    %24 = vector.broadcast %23 : vector<1x128xf32> to vector<2x128xf32>
    %25 = arith.addf %22, %24 : vector<2x128xf32>
    %26 = vector.shape_cast %25 : vector<2x128xf32> to vector<2x1x128xf32>
    %27 = vector.shape_cast %26 : vector<2x1x128xf32> to vector<2x1x128xf32>
    %28 = vector.broadcast %27 : vector<2x1x128xf32> to vector<2x8x128xf32>
    %c0_20 = arith.constant 0 : index
    %c0_21 = arith.constant 0 : index
    %c0_22 = arith.constant 0 : index
    %29 = vector.load %arg9[%c0_20, %c0_21, %c0_22] : memref<2x8x128xf32, #tpu.memory_space<vmem>>, vector<2x8x128xf32>
    tpu.vector_store %arg9[%c0_20, %c0_21, %c0_22], %28 {strides = array<i32>} : memref<2x8x128xf32, #tpu.memory_space<vmem>>, vector<2x8x128xf32>,
    %c0_23 = arith.constant 0 : index
    %c0_24 = arith.constant 0 : index
    %30 = vector.load %arg2[%c0_23, %c0_24] : memref<16x1xi32, #tpu.memory_space<vmem>>, vector<16x1xi32>
    %cst_25 = arith.constant dense<0xFF800000> : vector<2xf32>
    %31 = vector.multi_reduction <maximumf>, %25, %cst_25 [1] : vector<2x128xf32> to vector<2xf32>
    %32 = vector.shape_cast %31 : vector<2xf32> to vector<2x1xf32>
    %33 = vector.broadcast %32 : vector<2x1xf32> to vector<2x128xf32>
    %34 = arith.subf %25, %33 : vector<2x128xf32>
    %35 = math.exp %34 : vector<2x128xf32>
    %cst_26 = arith.constant dense<0.000000e+00> : vector<2xf32>
    %36 = vector.multi_reduction <add>, %35, %cst_26 [1] : vector<2x128xf32> to vector<2xf32>
    %37 = vector.shape_cast %36 : vector<2xf32> to vector<2x1xf32>
    %38 = math.log %37 : vector<2x1xf32>
    %39 = arith.addf %38, %32 : vector<2x1xf32>
    %40 = vector.broadcast %39 : vector<2x1xf32> to vector<2x128xf32>
    %41 = arith.subf %25, %40 : vector<2x128xf32>
    %c0_i32 = arith.constant 0 : i32
    %42 = vector.broadcast %c0_i32 : i32 to vector<16x1xi32>
    %43 = arith.cmpi ne, %30, %42 : vector<16x1xi32>
    %44 = arith.extui %43 : vector<16x1xi1> to vector<16x1xi32>
    %45 = arith.sitofp %44 : vector<16x1xi32> to vector<16x1xf32>
    %46 = tpu.iota {dimensions = array<i32: 1>} : vector<16x128xi32>
    %47 = vector.broadcast %30 : vector<16x1xi32> to vector<16x128xi32>
    %48 = arith.cmpi eq, %46, %47 : vector<16x128xi32>
    %cst_27 = arith.constant 0.000000e+00 : f32
    %49 = vector.shape_cast %45 : vector<16x1xf32> to vector<16x1xf32>
    %50 = vector.broadcast %49 : vector<16x1xf32> to vector<16x128xf32>
    %51 = vector.broadcast %cst_27 : f32 to vector<16x128xf32>
    %52 = arith.select %48, %50, %51 : vector<16x128xi1>, vector<16x128xf32>
    %53 = vector.shape_cast %52 : vector<16x128xf32> to vector<2x8x128xf32>
    %cst_28 = arith.constant dense<0.000000e+00> : vector<2x128xf32>
    %54 = vector.multi_reduction <add>, %53, %cst_28 [1] : vector<2x8x128xf32> to vector<2x128xf32>
    %55 = arith.mulf %41, %54 : vector<2x128xf32>
    %56 = vector.shape_cast %55 : vector<2x128xf32> to vector<1x2x128xf32>
    %cst_29 = arith.constant dense<0.000000e+00> : vector<1xf32>
    %57 = vector.multi_reduction <add>, %56, %cst_29 [1, 2] : vector<1x2x128xf32> to vector<1xf32>
    %58 = vector.shape_cast %57 : vector<1xf32> to vector<1x1x1xf32>
    %59 = vector.extract %58[0, 0, 0] : f32 from vector<1x1x1xf32>
    %60 = vector.shape_cast %45 : vector<16x1xf32> to vector<1x16x1xf32>
    %cst_30 = arith.constant dense<0.000000e+00> : vector<1xf32>
    %61 = vector.multi_reduction <add>, %60, %cst_30 [1, 2] : vector<1x16x1xf32> to vector<1xf32>
    %62 = vector.shape_cast %61 : vector<1xf32> to vector<1x1x1xf32>
    %63 = vector.extract %62[0, 0, 0] : f32 from vector<1x1x1xf32>
    %cst_31 = arith.constant 1.000000e+00 : f32
    %64 = arith.maximumf %63, %cst_31 : f32
    %cst_32 = arith.constant 0.000000e+00 : f32
    %65 = arith.subf %cst_32, %59 : f32
    %66 = arith.divf %65, %64 : f32
    %67 = vector.broadcast %66 : f32 to vector<1x1xf32>
    %c0_33 = arith.constant 0 : index
    %c0_34 = arith.constant 0 : index
    %68 = vector.load %arg10[%c0_33, %c0_34] : memref<1x1xf32, #tpu.memory_space<vmem>>, vector<1x1xf32>
    tpu.vector_store %arg10[%c0_33, %c0_34], %67 {strides = array<i32>} : memref<1x1xf32, #tpu.memory_space<vmem>>, vector<1x1xf32>,
    return
  }
  func.func @transform_0(%arg0: i32) -> (i32, i32, i32) {
    %c0_i32 = arith.constant 0 : i32
    %c0_i32_0 = arith.constant 0 : i32
    %c0_i32_1 = arith.constant 0 : i32
    %c0_i32_2 = arith.constant 0 : i32
    return %c0_i32, %c0_i32_0, %c0_i32_1 : i32, i32, i32
  }
  func.func @transform_1(%arg0: i32) -> (i32, i32) {
    %c0_i32 = arith.constant 0 : i32
    %c0_i32_0 = arith.constant 0 : i32
    %c0_i32_1 = arith.constant 0 : i32
    return %c0_i32, %c0_i32_0 : i32, i32
  }
  func.func @transform_2(%arg0: i32) -> (i32, i32) {
    %c0_i32 = arith.constant 0 : i32
    %c0_i32_0 = arith.constant 0 : i32
    %c0_i32_1 = arith.constant 0 : i32
    return %c0_i32, %c0_i32_0 : i32, i32
  }
  func.func @transform_3(%arg0: i32) -> (i32, i32) {
    %c0_i32 = arith.constant 0 : i32
    %c0_i32_0 = arith.constant 0 : i32
    %c0_i32_1 = arith.constant 0 : i32
    return %c0_i32, %c0_i32_0 : i32, i32
  }
  func.func @transform_4(%arg0: i32) -> (i32, i32) {
    %c0_i32 = arith.constant 0 : i32
    %c0_i32_0 = arith.constant 0 : i32
    %c0_i32_1 = arith.constant 0 : i32
    return %c0_i32, %c0_i32_0 : i32, i32
  }
  func.func @transform_5(%arg0: i32) -> (i32, i32) {
    %c0_i32 = arith.constant 0 : i32
    %c0_i32_0 = arith.constant 0 : i32
    %c0_i32_1 = arith.constant 0 : i32
    return %c0_i32, %c0_i32_0 : i32, i32
  }
  func.func @transform_6(%arg0: i32) -> (i32, i32) {
    %c0_i32 = arith.constant 0 : i32
    %c0_i32_0 = arith.constant 0 : i32
    %c0_i32_1 = arith.constant 0 : i32
    return %c0_i32, %c0_i32_0 : i32, i32
  }
  func.func @transform_7(%arg0: i32) -> (i32, i32) {
    %c0_i32 = arith.constant 0 : i32
    %c0_i32_0 = arith.constant 0 : i32
    %c0_i32_1 = arith.constant 0 : i32
    return %c0_i32, %c0_i32_0 : i32, i32
  }
  func.func @transform_8(%arg0: i32) -> (i32, i32, i32) {
    %c0_i32 = arith.constant 0 : i32
    %c0_i32_0 = arith.constant 0 : i32
    %c0_i32_1 = arith.constant 0 : i32
    %c0_i32_2 = arith.constant 0 : i32
    return %c0_i32, %c0_i32_0, %c0_i32_1 : i32, i32, i32
  }
  func.func @transform_9(%arg0: i32) -> (i32, i32) {
    %c0_i32 = arith.constant 0 : i32
    %c0_i32_0 = arith.constant 0 : i32
    %c0_i32_1 = arith.constant 0 : i32
    return %c0_i32, %c0_i32_0 : i32, i32
  }
}

</mosaic_0001>

<llo_original>
// kernel: summarize_forward.1
$region0: #{summarize_forward.1}
  #allocation0 [shape = 'u32[]', space=smem, size = 0x4, offset = 0x4, fixed_abs, tag = 'smem constant byte address 0x4 - core index']
  #allocation1 [shape = 'u32[144,128]{1,0:T(1,128)}', space=vmem, size = 0x12000, scoped, tag = 'internal scratch']
  %s0 = inlined_call_operand.vmem [shape: f32[2,16,768], index: 0, kind: input, shape index: {}]
  %s1 = inlined_call_operand.vmem [shape: s32[16,1], index: 1, kind: input, shape index: {}]
  %s2 = inlined_call_operand.vmem [shape: bf16[768,512], index: 2, kind: input, shape index: {}]
  %s3 = inlined_call_operand.vmem [shape: f32[1,512], index: 3, kind: input, shape index: {}]
  %s4 = inlined_call_operand.vmem [shape: bf16[512,256], index: 4, kind: input, shape index: {}]
  %s5 = inlined_call_operand.vmem [shape: f32[1,256], index: 5, kind: input, shape index: {}]
  %s6 = inlined_call_operand.vmem [shape: bf16[256,128], index: 6, kind: input, shape index: {}]
  %s7 = inlined_call_operand.vmem [shape: f32[1,128], index: 7, kind: input, shape index: {}]
  %s8 = inlined_call_operand.hbm [shape: f32[2,8,128], index: 8, kind: output, shape index: {0}]
  %s9 = inlined_call_operand.hbm [shape: f32[1,1], index: 9, kind: output, shape index: {1}]
  %10 = xla_tuple %s8, %s9
  %s11 = sld [smem:[#allocation0]]
  $region50: #{summarize_forward.1} parent=0
    _
  %s13 = ssub.s32 1, %s11
  %s14 = scalar_select 0, %s13, %s11
  $region1: #{summarize_forward.1} parent=0
    #allocation2 [shape = 'u8[8192]{0}', space=vmem, size = 0x2000, scoped, tag = 'output window, operand 0, single buffered']
    #allocation3 [shape = 's32[1]{0}', space=sflag, size = 0x4, scoped, tag = 'scoped memory for summarize_forward.1']
    #allocation4 [shape = 'u8[512]{0}', space=vmem, size = 0x400, scoped, tag = 'output window, operand 1, single buffered']
    #allocation5 [shape = 's32[1]{0}', space=sflag, size = 0x4, scoped, tag = 'scoped memory for summarize_forward.1']
    %15 = vsyncpa [#allocation3], 0
    %16 = vsyncpa [#allocation5], 0
    // Predicated region
    $region2: #{summarize_forward.1} parent=1 // pred_check
      _
    $region3: #{summarize_forward.1} parent=1 // pred_check_branch
      %18 = sbr.rel (0) target = $region5
    $region4: #{summarize_forward.1} parent=1 // pred_region
      _
    $region5: #{summarize_forward.1} parent=1 // pred_fallthru
      _
    // Predicated region
    $region6: #{summarize_forward.1} parent=1 // pred_check
      _
    $region7: #{summarize_forward.1} parent=1 // pred_check_branch
      %20 = sbr.rel (0) target = $region9
    $region8: #{summarize_forward.1} parent=1 // pred_region
      _
    $region9: #{summarize_forward.1} parent=1 // pred_fallthru
      _
    // Predicated region
    $region10: #{summarize_forward.1} parent=1 // pred_check
      _
    $region11: #{summarize_forward.1} parent=1 // pred_check_branch
      %22 = sbr.rel (0) target = $region13
    $region12: #{summarize_forward.1} parent=1 // pred_region
      _
    $region13: #{summarize_forward.1} parent=1 // pred_fallthru
      _
    // Predicated region
    $region14: #{summarize_forward.1} parent=1 // pred_check
      _
    $region15: #{summarize_forward.1} parent=1 // pred_check_branch
      %24 = sbr.rel (0) target = $region17
    $region16: #{summarize_forward.1} parent=1 // pred_region
      _
    $region17: #{summarize_forward.1} parent=1 // pred_fallthru
      _
    // Predicated region
    $region18: #{summarize_forward.1} parent=1 // pred_check
      _
    $region19: #{summarize_forward.1} parent=1 // pred_check_branch
      %26 = sbr.rel (0) target = $region21
    $region20: #{summarize_forward.1} parent=1 // pred_region
      _
    $region21: #{summarize_forward.1} parent=1 // pred_fallthru
      _
    // Predicated region
    $region22: #{summarize_forward.1} parent=1 // pred_check
      _
    $region23: #{summarize_forward.1} parent=1 // pred_check_branch
      %28 = sbr.rel (0) target = $region25
    $region24: #{summarize_forward.1} parent=1 // pred_region
      _
    $region25: #{summarize_forward.1} parent=1 // pred_fallthru
      _
    // Predicated region
    $region26: #{summarize_forward.1} parent=1 // pred_check
      _
    $region27: #{summarize_forward.1} parent=1 // pred_check_branch
      %30 = sbr.rel (0) target = $region29
    $region28: #{summarize_forward.1} parent=1 // pred_region
      _
    $region29: #{summarize_forward.1} parent=1 // pred_fallthru
      _
    // Predicated region
    $region30: #{summarize_forward.1} parent=1 // pred_check
      _
    $region31: #{summarize_forward.1} parent=1 // pred_check_branch
      %32 = sbr.rel (0) target = $region33
    $region32: #{summarize_forward.1} parent=1 // pred_region
      _
    $region33: #{summarize_forward.1} parent=1 // pred_fallthru
      _
    %v34 = vld [vmem:[%s0] sm:$0xff]
    %v35 = vld [vmem:[%s0 + $0x8] sm:$0xff]
    %v36 = vld [vmem:[%s0 + $0x10] sm:$0xff]
    %v37 = vld [vmem:[%s0 + $0x18] sm:$0xff]
    %v38 = vld [vmem:[%s0 + $0x20] sm:$0xff]
    %v39 = vld [vmem:[%s0 + $0x28] sm:$0xff]
    %v40 = vld [vmem:[%s0 + $0x30] sm:$0xff]
    %v41 = vld [vmem:[%s0 + $0x38] sm:$0xff]
    %v42 = vld [vmem:[%s0 + $0x40] sm:$0xff]
    %v43 = vld [vmem:[%s0 + $0x48] sm:$0xff]
    %v44 = vld [vmem:[%s0 + $0x50] sm:$0xff]
    %v45 = vld [vmem:[%s0 + $0x58] sm:$0xff]
    %v46 = vld [vmem:[%s0 + $0x60] sm:$0xff]
    %v47 = vld [vmem:[%s0 + $0x68] sm:$0xff]
    %v48 = vld [vmem:[%s0 + $0x70] sm:$0xff]
    %v49 = vld [vmem:[%s0 + $0x78] sm:$0xff]
    %v50 = vld [vmem:[%s0 + $0x80] sm:$0xff]
    %v51 = vld [vmem:[%s0 + $0x88] sm:$0xff]
    %v52 = vld [vmem:[%s0 + $0x90] sm:$0xff]
    %v53 = vld [vmem:[%s0 + $0x98] sm:$0xff]
    %v54 = vld [vmem:[%s0 + $0xa0] sm:$0xff]
    %v55 = vld [vmem:[%s0 + $0xa8] sm:$0xff]
    %v56 = vld [vmem:[%s0 + $0xb0] sm:$0xff]
    %v57 = vld [vmem:[%s0 + $0xb8] sm:$0xff]
    %v58 = vadd.f32 %v34, %v40
    %v59 = vrot.slane %v58, 4
    %v60 = vadd.f32 %v58, %v59
    %v61 = vrot.slane %v60, 2
    %v62 = vadd.f32 %v60, %v61
    %v63 = vrot.slane %v62, 1
    %v64 = vadd.f32 %v62, %v63
    %v65 = vadd.f32 %v35, %v41
    %v66 = vrot.slane %v65, 4
    %v67 = vadd.f32 %v65, %v66
    %v68 = vrot.slane %v67, 2
    %v69 = vadd.f32 %v67, %v68
    %v70 = vrot.slane %v69, 1
    %v71 = vadd.f32 %v69, %v70
    %v72 = vadd.f32 %v36, %v42
    %v73 = vrot.slane %v72, 4
    %v74 = vadd.f32 %v72, %v73
    %v75 = vrot.slane %v74, 2
    %v76 = vadd.f32 %v74, %v75
    %v77 = vrot.slane %v76, 1
    %v78 = vadd.f32 %v76, %v77
    %v79 = vadd.f32 %v37, %v43
    %v80 = vrot.slane %v79, 4
    %v81 = vadd.f32 %v79, %v80
    %v82 = vrot.slane %v81, 2
    %v83 = vadd.f32 %v81, %v82
    %v84 = vrot.slane %v83, 1
    %v85 = vadd.f32 %v83, %v84
    %v86 = vadd.f32 %v38, %v44
    %v87 = vrot.slane %v86, 4
    %v88 = vadd.f32 %v86, %v87
    %v89 = vrot.slane %v88, 2
    %v90 = vadd.f32 %v88, %v89
    %v91 = vrot.slane %v90, 1
    %v92 = vadd.f32 %v90, %v91
    %v93 = vadd.f32 %v39, %v45
    %v94 = vrot.slane %v93, 4
    %v95 = vadd.f32 %v93, %v94
    %v96 = vrot.slane %v95, 2
    %v97 = vadd.f32 %v95, %v96
    %v98 = vrot.slane %v97, 1
    %v99 = vadd.f32 %v97, %v98
    %v100 = vadd.f32 %v46, %v52
    %v101 = vrot.slane %v100, 4
    %v102 = vadd.f32 %v100, %v101
    %v103 = vrot.slane %v102, 2
    %v104 = vadd.f32 %v102, %v103
    %v105 = vrot.slane %v104, 1
    %v106 = vadd.f32 %v104, %v105
    %v107 = vadd.f32 %v47, %v53
    %v108 = vrot.slane %v107, 4
    %v109 = vadd.f32 %v107, %v108
    %v110 = vrot.slane %v109, 2
    %v111 = vadd.f32 %v109, %v110
    %v112 = vrot.slane %v111, 1
    %v113 = vadd.f32 %v111, %v112
    %v114 = vadd.f32 %v48, %v54
    %v115 = vrot.slane %v114, 4
    %v116 = vadd.f32 %v114, %v115
    %v117 = vrot.slane %v116, 2
    %v118 = vadd.f32 %v116, %v117
    %v119 = vrot.slane %v118, 1
    %v120 = vadd.f32 %v118, %v119
    %v121 = vadd.f32 %v49, %v55
    %v122 = vrot.slane %v121, 4
    %v123 = vadd.f32 %v121, %v122
    %v124 = vrot.slane %v123, 2
    %v125 = vadd.f32 %v123, %v124
    %v126 = vrot.slane %v125, 1
    %v127 = vadd.f32 %v125, %v126
    %v128 = vadd.f32 %v50, %v56
    %v129 = vrot.slane %v128, 4
    %v130 = vadd.f32 %v128, %v129
    %v131 = vrot.slane %v130, 2
    %v132 = vadd.f32 %v130, %v131
    %v133 = vrot.slane %v132, 1
    %v134 = vadd.f32 %v132, %v133
    %v135 = vadd.f32 %v51, %v57
    %v136 = vrot.slane %v135, 4
    %v137 = vadd.f32 %v135, %v136
    %v138 = vrot.slane %v137, 2
    %v139 = vadd.f32 %v137, %v138
    %v140 = vrot.slane %v139, 1
    %v141 = vadd.f32 %v139, %v140
    %v142 = vmul.f32 %v64, 0.0625
    %v143 = vmul.f32 %v71, 0.0625
    %v144 = vmul.f32 %v78, 0.0625
    %v145 = vmul.f32 %v85, 0.0625
    %v146 = vmul.f32 %v92, 0.0625
    %v147 = vmul.f32 %v99, 0.0625
    %v148 = vmul.f32 %v106, 0.0625
    %v149 = vmul.f32 %v113, 0.0625
    %v150 = vmul.f32 %v120, 0.0625
    %v151 = vmul.f32 %v127, 0.0625
    %v152 = vmul.f32 %v134, 0.0625
    %v153 = vmul.f32 %v141, 0.0625
    %v154 = vpack.c.bf16 %v142, %v142
    %v155 = vpack.c.bf16 %v143, %v143
    %v156 = vpack.c.bf16 %v144, %v144
    %v157 = vpack.c.bf16 %v145, %v145
    %v158 = vpack.c.bf16 %v146, %v146
    %v159 = vpack.c.bf16 %v147, %v147
    %v160 = vpack.c.bf16 %v148, %v148
    %v161 = vpack.c.bf16 %v149, %v149
    %v162 = vpack.c.bf16 %v150, %v150
    %v163 = vpack.c.bf16 %v151, %v151
    %v164 = vpack.c.bf16 %v152, %v152
    %v165 = vpack.c.bf16 %v153, %v153
    %v166 = vld [vmem:[%s2] sm:$0xff]
    %v167 = vld [vmem:[%s2 + $0x8] sm:$0xff]
    %v168 = vld [vmem:[%s2 + $0x10] sm:$0xff]
    %v169 = vld [vmem:[%s2 + $0x18] sm:$0xff]
    %v170 = vld [vmem:[%s2 + $0x20] sm:$0xff]
    %v171 = vld [vmem:[%s2 + $0x28] sm:$0xff]
    %v172 = vld [vmem:[%s2 + $0x30] sm:$0xff]
    %v173 = vld [vmem:[%s2 + $0x38] sm:$0xff]
    %v174 = vld [vmem:[%s2 + $0x40] sm:$0xff]
    %v175 = vld [vmem:[%s2 + $0x48] sm:$0xff]
    %v176 = vld [vmem:[%s2 + $0x50] sm:$0xff]
    %v177 = vld [vmem:[%s2 + $0x58] sm:$0xff]
    %v178 = vld [vmem:[%s2 + $0x60] sm:$0xff]
    %v179 = vld [vmem:[%s2 + $0x68] sm:$0xff]
    %v180 = vld [vmem:[%s2 + $0x70] sm:$0xff]
    %v181 = vld [vmem:[%s2 + $0x78] sm:$0xff]
    %v182 = vld [vmem:[%s2 + $0x80] sm:$0xff]
    %v183 = vld [vmem:[%s2 + $0x88] sm:$0xff]
    %v184 = vld [vmem:[%s2 + $0x90] sm:$0xff]
    %v185 = vld [vmem:[%s2 + $0x98] sm:$0xff]
    %v186 = vld [vmem:[%s2 + $0xa0] sm:$0xff]
    %v187 = vld [vmem:[%s2 + $0xa8] sm:$0xff]
    %v188 = vld [vmem:[%s2 + $0xb0] sm:$0xff]
    %v189 = vld [vmem:[%s2 + $0xb8] sm:$0xff]
    %v190 = vld [vmem:[%s2 + $0xc0] sm:$0xff]
    %v191 = vld [vmem:[%s2 + $0xc8] sm:$0xff]
    %v192 = vld [vmem:[%s2 + $0xd0] sm:$0xff]
    %v193 = vld [vmem:[%s2 + $0xd8] sm:$0xff]
    %v194 = vld [vmem:[%s2 + $0xe0] sm:$0xff]
    %v195 = vld [vmem:[%s2 + $0xe8] sm:$0xff]
    %v196 = vld [vmem:[%s2 + $0xf0] sm:$0xff]
    %v197 = vld [vmem:[%s2 + $0xf8] sm:$0xff]
    %v198 = vld [vmem:[%s2 + $0x100] sm:$0xff]
    %v199 = vld [vmem:[%s2 + $0x108] sm:$0xff]
    %v200 = vld [vmem:[%s2 + $0x110] sm:$0xff]
    %v201 = vld [vmem:[%s2 + $0x118] sm:$0xff]
    %v202 = vld [vmem:[%s2 + $0x120] sm:$0xff]
    %v203 = vld [vmem:[%s2 + $0x128] sm:$0xff]
    %v204 = vld [vmem:[%s2 + $0x130] sm:$0xff]
    %v205 = vld [vmem:[%s2 + $0x138] sm:$0xff]
    %v206 = vld [vmem:[%s2 + $0x140] sm:$0xff]
    %v207 = vld [vmem:[%s2 + $0x148] sm:$0xff]
    %v208 = vld [vmem:[%s2 + $0x150] sm:$0xff]
    %v209 = vld [vmem:[%s2 + $0x158] sm:$0xff]
    %v210 = vld [vmem:[%s2 + $0x160] sm:$0xff]
    %v211 = vld [vmem:[%s2 + $0x168] sm:$0xff]
    %v212 = vld [vmem:[%s2 + $0x170] sm:$0xff]
    %v213 = vld [vmem:[%s2 + $0x178] sm:$0xff]
    %v214 = vld [vmem:[%s2 + $0x180] sm:$0xff]
    %v215 = vld [vmem:[%s2 + $0x188] sm:$0xff]
    %v216 = vld [vmem:[%s2 + $0x190] sm:$0xff]
    %v217 = vld [vmem:[%s2 + $0x198] sm:$0xff]
    %v218 = vld [vmem:[%s2 + $0x1a0] sm:$0xff]
    %v219 = vld [vmem:[%s2 + $0x1a8] sm:$0xff]
    %v220 = vld [vmem:[%s2 + $0x1b0] sm:$0xff]
    %v221 = vld [vmem:[%s2 + $0x1b8] sm:$0xff]
    %v222 = vld [vmem:[%s2 + $0x1c0] sm:$0xff]
    %v223 = vld [vmem:[%s2 + $0x1c8] sm:$0xff]
    %v224 = vld [vmem:[%s2 + $0x1d0] sm:$0xff]
    %v225 = vld [vmem:[%s2 + $0x1d8] sm:$0xff]
    %v226 = vld [vmem:[%s2 + $0x1e0] sm:$0xff]
    %v227 = vld [vmem:[%s2 + $0x1e8] sm:$0xff]
    %v228 = vld [vmem:[%s2 + $0x1f0] sm:$0xff]
    %v229 = vld [vmem:[%s2 + $0x1f8] sm:$0xff]
    %v230 = vld [vmem:[%s2 + $0x200] sm:$0xff]
    %v231 = vld [vmem:[%s2 + $0x208] sm:$0xff]
    %v232 = vld [vmem:[%s2 + $0x210] sm:$0xff]
    %v233 = vld [vmem:[%s2 + $0x218] sm:$0xff]
    %v234 = vld [vmem:[%s2 + $0x220] sm:$0xff]
    %v235 = vld [vmem:[%s2 + $0x228] sm:$0xff]
    %v236 = vld [vmem:[%s2 + $0x230] sm:$0xff]
    %v237 = vld [vmem:[%s2 + $0x238] sm:$0xff]
    %v238 = vld [vmem:[%s2 + $0x240] sm:$0xff]
    %v239 = vld [vmem:[%s2 + $0x248] sm:$0xff]
    %v240 = vld [vmem:[%s2 + $0x250] sm:$0xff]
    %v241 = vld [vmem:[%s2 + $0x258] sm:$0xff]
    %v242 = vld [vmem:[%s2 + $0x260] sm:$0xff]
    %v243 = vld [vmem:[%s2 + $0x268] sm:$0xff]
    %v244 = vld [vmem:[%s2 + $0x270] sm:$0xff]
    %v245 = vld [vmem:[%s2 + $0x278] sm:$0xff]
    %v246 = vld [vmem:[%s2 + $0x280] sm:$0xff]
    %v247 = vld [vmem:[%s2 + $0x288] sm:$0xff]
    %v248 = vld [vmem:[%s2 + $0x290] sm:$0xff]
    %v249 = vld [vmem:[%s2 + $0x298] sm:$0xff]
    %v250 = vld [vmem:[%s2 + $0x2a0] sm:$0xff]
    %v251 = vld [vmem:[%s2 + $0x2a8] sm:$0xff]
    %v252 = vld [vmem:[%s2 + $0x2b0] sm:$0xff]
    %v253 = vld [vmem:[%s2 + $0x2b8] sm:$0xff]
    %v254 = vld [vmem:[%s2 + $0x2c0] sm:$0xff]
    %v255 = vld [vmem:[%s2 + $0x2c8] sm:$0xff]
    %v256 = vld [vmem:[%s2 + $0x2d0] sm:$0xff]
    %v257 = vld [vmem:[%s2 + $0x2d8] sm:$0xff]
    %v258 = vld [vmem:[%s2 + $0x2e0] sm:$0xff]
    %v259 = vld [vmem:[%s2 + $0x2e8] sm:$0xff]
    %v260 = vld [vmem:[%s2 + $0x2f0] sm:$0xff]
    %v261 = vld [vmem:[%s2 + $0x2f8] sm:$0xff]
    %v262 = vld [vmem:[%s2 + $0x300] sm:$0xff]
    %v263 = vld [vmem:[%s2 + $0x308] sm:$0xff]
    %v264 = vld [vmem:[%s2 + $0x310] sm:$0xff]
    %v265 = vld [vmem:[%s2 + $0x318] sm:$0xff]
    %v266 = vld [vmem:[%s2 + $0x320] sm:$0xff]
    %v267 = vld [vmem:[%s2 + $0x328] sm:$0xff]
    %v268 = vld [vmem:[%s2 + $0x330] sm:$0xff]
    %v269 = vld [vmem:[%s2 + $0x338] sm:$0xff]
    %v270 = vld [vmem:[%s2 + $0x340] sm:$0xff]
    %v271 = vld [vmem:[%s2 + $0x348] sm:$0xff]
    %v272 = vld [vmem:[%s2 + $0x350] sm:$0xff]
    %v273 = vld [vmem:[%s2 + $0x358] sm:$0xff]
    %v274 = vld [vmem:[%s2 + $0x360] sm:$0xff]
    %v275 = vld [vmem:[%s2 + $0x368] sm:$0xff]
    %v276 = vld [vmem:[%s2 + $0x370] sm:$0xff]
    %v277 = vld [vmem:[%s2 + $0x378] sm:$0xff]
    %v278 = vld [vmem:[%s2 + $0x380] sm:$0xff]
    %v279 = vld [vmem:[%s2 + $0x388] sm:$0xff]
    %v280 = vld [vmem:[%s2 + $0x390] sm:$0xff]
    %v281 = vld [vmem:[%s2 + $0x398] sm:$0xff]
    %v282 = vld [vmem:[%s2 + $0x3a0] sm:$0xff]
    %v283 = vld [vmem:[%s2 + $0x3a8] sm:$0xff]
    %v284 = vld [vmem:[%s2 + $0x3b0] sm:$0xff]
    %v285 = vld [vmem:[%s2 + $0x3b8] sm:$0xff]
    %v286 = vld [vmem:[%s2 + $0x3c0] sm:$0xff]
    %v287 = vld [vmem:[%s2 + $0x3c8] sm:$0xff]
    %v288 = vld [vmem:[%s2 + $0x3d0] sm:$0xff]
    %v289 = vld [vmem:[%s2 + $0x3d8] sm:$0xff]
    %v290 = vld [vmem:[%s2 + $0x3e0] sm:$0xff]
    %v291 = vld [vmem:[%s2 + $0x3e8] sm:$0xff]
    %v292 = vld [vmem:[%s2 + $0x3f0] sm:$0xff]
    %v293 = vld [vmem:[%s2 + $0x3f8] sm:$0xff]
    %v294 = vld [vmem:[%s2 + $0x400] sm:$0xff]
    %v295 = vld [vmem:[%s2 + $0x408] sm:$0xff]
    %v296 = vld [vmem:[%s2 + $0x410] sm:$0xff]
    %v297 = vld [vmem:[%s2 + $0x418] sm:$0xff]
    %v298 = vld [vmem:[%s2 + $0x420] sm:$0xff]
    %v299 = vld [vmem:[%s2 + $0x428] sm:$0xff]
    %v300 = vld [vmem:[%s2 + $0x430] sm:$0xff]
    %v301 = vld [vmem:[%s2 + $0x438] sm:$0xff]
    %v302 = vld [vmem:[%s2 + $0x440] sm:$0xff]
    %v303 = vld [vmem:[%s2 + $0x448] sm:$0xff]
    %v304 = vld [vmem:[%s2 + $0x450] sm:$0xff]
    %v305 = vld [vmem:[%s2 + $0x458] sm:$0xff]
    %v306 = vld [vmem:[%s2 + $0x460] sm:$0xff]
    %v307 = vld [vmem:[%s2 + $0x468] sm:$0xff]
    %v308 = vld [vmem:[%s2 + $0x470] sm:$0xff]
    %v309 = vld [vmem:[%s2 + $0x478] sm:$0xff]
    %v310 = vld [vmem:[%s2 + $0x480] sm:$0xff]
    %v311 = vld [vmem:[%s2 + $0x488] sm:$0xff]
    %v312 = vld [vmem:[%s2 + $0x490] sm:$0xff]
    %v313 = vld [vmem:[%s2 + $0x498] sm:$0xff]
    %v314 = vld [vmem:[%s2 + $0x4a0] sm:$0xff]
    %v315 = vld [vmem:[%s2 + $0x4a8] sm:$0xff]
    %v316 = vld [vmem:[%s2 + $0x4b0] sm:$0xff]
    %v317 = vld [vmem:[%s2 + $0x4b8] sm:$0xff]
    %v318 = vld [vmem:[%s2 + $0x4c0] sm:$0xff]
    %v319 = vld [vmem:[%s2 + $0x4c8] sm:$0xff]
    %v320 = vld [vmem:[%s2 + $0x4d0] sm:$0xff]
    %v321 = vld [vmem:[%s2 + $0x4d8] sm:$0xff]
    %v322 = vld [vmem:[%s2 + $0x4e0] sm:$0xff]
    %v323 = vld [vmem:[%s2 + $0x4e8] sm:$0xff]
    %v324 = vld [vmem:[%s2 + $0x4f0] sm:$0xff]
    %v325 = vld [vmem:[%s2 + $0x4f8] sm:$0xff]
    %v326 = vld [vmem:[%s2 + $0x500] sm:$0xff]
    %v327 = vld [vmem:[%s2 + $0x508] sm:$0xff]
    %v328 = vld [vmem:[%s2 + $0x510] sm:$0xff]
    %v329 = vld [vmem:[%s2 + $0x518] sm:$0xff]
    %v330 = vld [vmem:[%s2 + $0x520] sm:$0xff]
    %v331 = vld [vmem:[%s2 + $0x528] sm:$0xff]
    %v332 = vld [vmem:[%s2 + $0x530] sm:$0xff]
    %v333 = vld [vmem:[%s2 + $0x538] sm:$0xff]
    %v334 = vld [vmem:[%s2 + $0x540] sm:$0xff]
    %v335 = vld [vmem:[%s2 + $0x548] sm:$0xff]
    %v336 = vld [vmem:[%s2 + $0x550] sm:$0xff]
    %v337 = vld [vmem:[%s2 + $0x558] sm:$0xff]
    %v338 = vld [vmem:[%s2 + $0x560] sm:$0xff]
    %v339 = vld [vmem:[%s2 + $0x568] sm:$0xff]
    %v340 = vld [vmem:[%s2 + $0x570] sm:$0xff]
    %v341 = vld [vmem:[%s2 + $0x578] sm:$0xff]
    %v342 = vld [vmem:[%s2 + $0x580] sm:$0xff]
    %v343 = vld [vmem:[%s2 + $0x588] sm:$0xff]
    %v344 = vld [vmem:[%s2 + $0x590] sm:$0xff]
    %v345 = vld [vmem:[%s2 + $0x598] sm:$0xff]
    %v346 = vld [vmem:[%s2 + $0x5a0] sm:$0xff]
    %v347 = vld [vmem:[%s2 + $0x5a8] sm:$0xff]
    %v348 = vld [vmem:[%s2 + $0x5b0] sm:$0xff]
    %v349 = vld [vmem:[%s2 + $0x5b8] sm:$0xff]
    %v350 = vld [vmem:[%s2 + $0x5c0] sm:$0xff]
    %v351 = vld [vmem:[%s2 + $0x5c8] sm:$0xff]
    %v352 = vld [vmem:[%s2 + $0x5d0] sm:$0xff]
    %v353 = vld [vmem:[%s2 + $0x5d8] sm:$0xff]
    %v354 = vld [vmem:[%s2 + $0x5e0] sm:$0xff]
    %v355 = vld [vmem:[%s2 + $0x5e8] sm:$0xff]
    %v356 = vld [vmem:[%s2 + $0x5f0] sm:$0xff]
    %v357 = vld [vmem:[%s2 + $0x5f8] sm:$0xff]
    %v358 = vld [vmem:[%s3] sm:$0xf]
    %v360 = vlaneseq
    %v361 = vshrl.u32 %v360, 7
    %v362 = vsub.s32 0, %v361
    %v363 = vrot.slane %v358, %v362
    %v364 = vlaneseq
    %v365 = vshrl.u32 %v364, 7
    %v366 = vsub.s32 1, %v365
    %v367 = vrot.slane %v358, %v366
    %v368 = vlaneseq
    %v369 = vshrl.u32 %v368, 7
    %v370 = vsub.s32 2, %v369
    %v371 = vrot.slane %v358, %v370
    %v372 = vlaneseq
    %v373 = vshrl.u32 %v372, 7
    %v374 = vsub.s32 3, %v373
    %v375 = vrot.slane %v358, %v374
    %v392 = vunpack.c.l.b16 %v154
    %v393 = vunpack.c.l.b16 %v155
    %v394 = vunpack.c.l.b16 %v156
    %v395 = vunpack.c.l.b16 %v157
    %v396 = vunpack.c.l.b16 %v158
    %v397 = vunpack.c.l.b16 %v159
    %v398 = vunpack.c.l.b16 %v160
    %v399 = vunpack.c.l.b16 %v161
    %v400 = vunpack.c.l.b16 %v162
    %v401 = vunpack.c.l.b16 %v163
    %v402 = vunpack.c.l.b16 %v164
    %v403 = vunpack.c.l.b16 %v165
    %vm404 = vcmask 1041409
    %v405 = vsel %vm404, %v398, %v392
    %v406 = vsel %vm404, %v399, %v393
    %v407 = vsel %vm404, %v400, %v394
    %v408 = vsel %vm404, %v401, %v395
    %v409 = vsel %vm404, %v402, %v396
    %v410 = vsel %vm404, %v403, %v397
    %v411 = vpack.c.b16 %v405, %v405
    %v412 = vpack.c.b16 %v406, %v406
    %v413 = vpack.c.b16 %v407, %v407
    %v414 = vpack.c.b16 %v408, %v408
    %v415 = vpack.c.b16 %v409, %v409
    %v416 = vpack.c.b16 %v410, %v410
    %v615 = vunpack.c.l.b16 %v166
    %v616 = vunpack.c.h.b16 %v166
    %v617 = vunpack.c.l.b16 %v167
    %v618 = vunpack.c.h.b16 %v167
    %v619 = vunpack.c.l.b16 %v168
    %v620 = vunpack.c.h.b16 %v168
    %v621 = vunpack.c.l.b16 %v169
    %v622 = vunpack.c.h.b16 %v169
    %v623 = vunpack.c.l.b16 %v170
    %v624 = vunpack.c.h.b16 %v170
    %v625 = vunpack.c.l.b16 %v171
    %v626 = vunpack.c.h.b16 %v171
    %v627 = vunpack.c.l.b16 %v172
    %v628 = vunpack.c.h.b16 %v172
    %v629 = vunpack.c.l.b16 %v173
    %v630 = vunpack.c.h.b16 %v173
    %v631 = vunpack.c.l.b16 %v174
    %v632 = vunpack.c.h.b16 %v174
    %v633 = vunpack.c.l.b16 %v175
    %v634 = vunpack.c.h.b16 %v175
    %v635 = vunpack.c.l.b16 %v176
    %v636 = vunpack.c.h.b16 %v176
    %v637 = vunpack.c.l.b16 %v177
    %v638 = vunpack.c.h.b16 %v177
    %v639 = vunpack.c.l.b16 %v178
    %v640 = vunpack.c.h.b16 %v178
    %v641 = vunpack.c.l.b16 %v179
    %v642 = vunpack.c.h.b16 %v179
    %v643 = vunpack.c.l.b16 %v180
    %v644 = vunpack.c.h.b16 %v180
    %v645 = vunpack.c.l.b16 %v181
    %v646 = vunpack.c.h.b16 %v181
    %v647 = vunpack.c.l.b16 %v182
    %v648 = vunpack.c.h.b16 %v182
    %v649 = vunpack.c.l.b16 %v183
    %v650 = vunpack.c.h.b16 %v183
    %v651 = vunpack.c.l.b16 %v184
    %v652 = vunpack.c.h.b16 %v184
    %v653 = vunpack.c.l.b16 %v185
    %v654 = vunpack.c.h.b16 %v185
    %v655 = vunpack.c.l.b16 %v186
    %v656 = vunpack.c.h.b16 %v186
    %v657 = vunpack.c.l.b16 %v187
    %v658 = vunpack.c.h.b16 %v187
    %v659 = vunpack.c.l.b16 %v188
    %v660 = vunpack.c.h.b16 %v188
    %v661 = vunpack.c.l.b16 %v189
    %v662 = vunpack.c.h.b16 %v189
    %v663 = vunpack.c.l.b16 %v190
    %v664 = vunpack.c.h.b16 %v190
    %v665 = vunpack.c.l.b16 %v191
    %v666 = vunpack.c.h.b16 %v191
    %v667 = vunpack.c.l.b16 %v192
    %v668 = vunpack.c.h.b16 %v192
    %v669 = vunpack.c.l.b16 %v193
    %v670 = vunpack.c.h.b16 %v193
    %v671 = vunpack.c.l.b16 %v194
    %v672 = vunpack.c.h.b16 %v194
    %v673 = vunpack.c.l.b16 %v195
    %v674 = vunpack.c.h.b16 %v195
    %v675 = vunpack.c.l.b16 %v196
    %v676 = vunpack.c.h.b16 %v196
    %v677 = vunpack.c.l.b16 %v197
    %v678 = vunpack.c.h.b16 %v197
    %v679 = vunpack.c.l.b16 %v198
    %v680 = vunpack.c.h.b16 %v198
    %v681 = vunpack.c.l.b16 %v199
    %v682 = vunpack.c.h.b16 %v199
    %v683 = vunpack.c.l.b16 %v200
    %v684 = vunpack.c.h.b16 %v200
    %v685 = vunpack.c.l.b16 %v201
    %v686 = vunpack.c.h.b16 %v201
    %v687 = vunpack.c.l.b16 %v202
    %v688 = vunpack.c.h.b16 %v202
    %v689 = vunpack.c.l.b16 %v203
    %v690 = vunpack.c.h.b16 %v203
    %v691 = vunpack.c.l.b16 %v204
    %v692 = vunpack.c.h.b16 %v204
    %v693 = vunpack.c.l.b16 %v205
    %v694 = vunpack.c.h.b16 %v205
    %v695 = vunpack.c.l.b16 %v206
    %v696 = vunpack.c.h.b16 %v206
    %v697 = vunpack.c.l.b16 %v207
    %v698 = vunpack.c.h.b16 %v207
    %v699 = vunpack.c.l.b16 %v208
    %v700 = vunpack.c.h.b16 %v208
    %v701 = vunpack.c.l.b16 %v209
    %v702 = vunpack.c.h.b16 %v209
    %v703 = vunpack.c.l.b16 %v210
    %v704 = vunpack.c.h.b16 %v210
    %v705 = vunpack.c.l.b16 %v211
    %v706 = vunpack.c.h.b16 %v211
    %v707 = vunpack.c.l.b16 %v212
    %v708 = vunpack.c.h.b16 %v212
    %v709 = vunpack.c.l.b16 %v213
    %v710 = vunpack.c.h.b16 %v213
    %v711 = vunpack.c.l.b16 %v214
    %v712 = vunpack.c.h.b16 %v214
    %v713 = vunpack.c.l.b16 %v215
    %v714 = vunpack.c.h.b16 %v215
    %v715 = vunpack.c.l.b16 %v216
    %v716 = vunpack.c.h.b16 %v216
    %v717 = vunpack.c.l.b16 %v217
    %v718 = vunpack.c.h.b16 %v217
    %v719 = vunpack.c.l.b16 %v218
    %v720 = vunpack.c.h.b16 %v218
    %v721 = vunpack.c.l.b16 %v219
    %v722 = vunpack.c.h.b16 %v219
    %v723 = vunpack.c.l.b16 %v220
    %v724 = vunpack.c.h.b16 %v220
    %v725 = vunpack.c.l.b16 %v221
    %v726 = vunpack.c.h.b16 %v221
    %v727 = vunpack.c.l.b16 %v222
    %v728 = vunpack.c.h.b16 %v222
    %v729 = vunpack.c.l.b16 %v223
    %v730 = vunpack.c.h.b16 %v223
    %v731 = vunpack.c.l.b16 %v224
    %v732 = vunpack.c.h.b16 %v224
    %v733 = vunpack.c.l.b16 %v225
    %v734 = vunpack.c.h.b16 %v225
    %v735 = vunpack.c.l.b16 %v226
    %v736 = vunpack.c.h.b16 %v226
    %v737 = vunpack.c.l.b16 %v227
    %v738 = vunpack.c.h.b16 %v227
    %v739 = vunpack.c.l.b16 %v228
    %v740 = vunpack.c.h.b16 %v228
    %v741 = vunpack.c.l.b16 %v229
    %v742 = vunpack.c.h.b16 %v229
    %v743 = vunpack.c.l.b16 %v230
    %v744 = vunpack.c.h.b16 %v230
    %v745 = vunpack.c.l.b16 %v231
    %v746 = vunpack.c.h.b16 %v231
    %v747 = vunpack.c.l.b16 %v232
    %v748 = vunpack.c.h.b16 %v232
    %v749 = vunpack.c.l.b16 %v233
    %v750 = vunpack.c.h.b16 %v233
    %v751 = vunpack.c.l.b16 %v234
    %v752 = vunpack.c.h.b16 %v234
    %v753 = vunpack.c.l.b16 %v235
    %v754 = vunpack.c.h.b16 %v235
    %v755 = vunpack.c.l.b16 %v236
    %v756 = vunpack.c.h.b16 %v236
    %v757 = vunpack.c.l.b16 %v237
    %v758 = vunpack.c.h.b16 %v237
    %v759 = vunpack.c.l.b16 %v238
    %v760 = vunpack.c.h.b16 %v238
    %v761 = vunpack.c.l.b16 %v239
    %v762 = vunpack.c.h.b16 %v239
    %v763 = vunpack.c.l.b16 %v240
    %v764 = vunpack.c.h.b16 %v240
    %v765 = vunpack.c.l.b16 %v241
    %v766 = vunpack.c.h.b16 %v241
    %v767 = vunpack.c.l.b16 %v242
    %v768 = vunpack.c.h.b16 %v242
    %v769 = vunpack.c.l.b16 %v243
    %v770 = vunpack.c.h.b16 %v243
    %v771 = vunpack.c.l.b16 %v244
    %v772 = vunpack.c.h.b16 %v244
    %v773 = vunpack.c.l.b16 %v245
    %v774 = vunpack.c.h.b16 %v245
    %v775 = vunpack.c.l.b16 %v246
    %v776 = vunpack.c.h.b16 %v246
    %v777 = vunpack.c.l.b16 %v247
    %v778 = vunpack.c.h.b16 %v247
    %v779 = vunpack.c.l.b16 %v248
    %v780 = vunpack.c.h.b16 %v248
    %v781 = vunpack.c.l.b16 %v249
    %v782 = vunpack.c.h.b16 %v249
    %v783 = vunpack.c.l.b16 %v250
    %v784 = vunpack.c.h.b16 %v250
    %v785 = vunpack.c.l.b16 %v251
    %v786 = vunpack.c.h.b16 %v251
    %v787 = vunpack.c.l.b16 %v252
    %v788 = vunpack.c.h.b16 %v252
    %v789 = vunpack.c.l.b16 %v253
    %v790 = vunpack.c.h.b16 %v253
    %v791 = vunpack.c.l.b16 %v254
    %v792 = vunpack.c.h.b16 %v254
    %v793 = vunpack.c.l.b16 %v255
    %v794 = vunpack.c.h.b16 %v255
    %v795 = vunpack.c.l.b16 %v256
    %v796 = vunpack.c.h.b16 %v256
    %v797 = vunpack.c.l.b16 %v257
    %v798 = vunpack.c.h.b16 %v257
    %v799 = vunpack.c.l.b16 %v258
    %v800 = vunpack.c.h.b16 %v258
    %v801 = vunpack.c.l.b16 %v259
    %v802 = vunpack.c.h.b16 %v259
    %v803 = vunpack.c.l.b16 %v260
    %v804 = vunpack.c.h.b16 %v260
    %v805 = vunpack.c.l.b16 %v261
    %v806 = vunpack.c.h.b16 %v261
    %v807 = vunpack.c.l.b16 %v262
    %v808 = vunpack.c.h.b16 %v262
    %v809 = vunpack.c.l.b16 %v263
    %v810 = vunpack.c.h.b16 %v263
    %v811 = vunpack.c.l.b16 %v264
    %v812 = vunpack.c.h.b16 %v264
    %v813 = vunpack.c.l.b16 %v265
    %v814 = vunpack.c.h.b16 %v265
    %v815 = vunpack.c.l.b16 %v266
    %v816 = vunpack.c.h.b16 %v266
    %v817 = vunpack.c.l.b16 %v267
    %v818 = vunpack.c.h.b16 %v267
    %v819 = vunpack.c.l.b16 %v268
    %v820 = vunpack.c.h.b16 %v268
    %v821 = vunpack.c.l.b16 %v269
    %v822 = vunpack.c.h.b16 %v269
    %v823 = vunpack.c.l.b16 %v270
    %v824 = vunpack.c.h.b16 %v270
    %v825 = vunpack.c.l.b16 %v271
    %v826 = vunpack.c.h.b16 %v271
    %v827 = vunpack.c.l.b16 %v272
    %v828 = vunpack.c.h.b16 %v272
    %v829 = vunpack.c.l.b16 %v273
    %v830 = vunpack.c.h.b16 %v273
    %v831 = vunpack.c.l.b16 %v274
    %v832 = vunpack.c.h.b16 %v274
    %v833 = vunpack.c.l.b16 %v275
    %v834 = vunpack.c.h.b16 %v275
    %v835 = vunpack.c.l.b16 %v276
    %v836 = vunpack.c.h.b16 %v276
    %v837 = vunpack.c.l.b16 %v277
    %v838 = vunpack.c.h.b16 %v277
    %v839 = vunpack.c.l.b16 %v278
    %v840 = vunpack.c.h.b16 %v278
    %v841 = vunpack.c.l.b16 %v279
    %v842 = vunpack.c.h.b16 %v279
    %v843 = vunpack.c.l.b16 %v280
    %v844 = vunpack.c.h.b16 %v280
    %v845 = vunpack.c.l.b16 %v281
    %v846 = vunpack.c.h.b16 %v281
    %v847 = vunpack.c.l.b16 %v282
    %v848 = vunpack.c.h.b16 %v282
    %v849 = vunpack.c.l.b16 %v283
    %v850 = vunpack.c.h.b16 %v283
    %v851 = vunpack.c.l.b16 %v284
    %v852 = vunpack.c.h.b16 %v284
    %v853 = vunpack.c.l.b16 %v285
    %v854 = vunpack.c.h.b16 %v285
    %v855 = vunpack.c.l.b16 %v286
    %v856 = vunpack.c.h.b16 %v286
    %v857 = vunpack.c.l.b16 %v287
    %v858 = vunpack.c.h.b16 %v287
    %v859 = vunpack.c.l.b16 %v288
    %v860 = vunpack.c.h.b16 %v288
    %v861 = vunpack.c.l.b16 %v289
    %v862 = vunpack.c.h.b16 %v289
    %v863 = vunpack.c.l.b16 %v290
    %v864 = vunpack.c.h.b16 %v290
    %v865 = vunpack.c.l.b16 %v291
    %v866 = vunpack.c.h.b16 %v291
    %v867 = vunpack.c.l.b16 %v292
    %v868 = vunpack.c.h.b16 %v292
    %v869 = vunpack.c.l.b16 %v293
    %v870 = vunpack.c.h.b16 %v293
    %v871 = vunpack.c.l.b16 %v294
    %v872 = vunpack.c.h.b16 %v294
    %v873 = vunpack.c.l.b16 %v295
    %v874 = vunpack.c.h.b16 %v295
    %v875 = vunpack.c.l.b16 %v296
    %v876 = vunpack.c.h.b16 %v296
    %v877 = vunpack.c.l.b16 %v297
    %v878 = vunpack.c.h.b16 %v297
    %v879 = vunpack.c.l.b16 %v298
    %v880 = vunpack.c.h.b16 %v298
    %v881 = vunpack.c.l.b16 %v299
    %v882 = vunpack.c.h.b16 %v299
    %v883 = vunpack.c.l.b16 %v300
    %v884 = vunpack.c.h.b16 %v300
    %v885 = vunpack.c.l.b16 %v301
    %v886 = vunpack.c.h.b16 %v301
    %v887 = vunpack.c.l.b16 %v302
    %v888 = vunpack.c.h.b16 %v302
    %v889 = vunpack.c.l.b16 %v303
    %v890 = vunpack.c.h.b16 %v303
    %v891 = vunpack.c.l.b16 %v304
    %v892 = vunpack.c.h.b16 %v304
    %v893 = vunpack.c.l.b16 %v305
    %v894 = vunpack.c.h.b16 %v305
    %v895 = vunpack.c.l.b16 %v306
    %v896 = vunpack.c.h.b16 %v306
    %v897 = vunpack.c.l.b16 %v307
    %v898 = vunpack.c.h.b16 %v307
    %v899 = vunpack.c.l.b16 %v308
    %v900 = vunpack.c.h.b16 %v308
    %v901 = vunpack.c.l.b16 %v309
    %v902 = vunpack.c.h.b16 %v309
    %v903 = vunpack.c.l.b16 %v310
    %v904 = vunpack.c.h.b16 %v310
    %v905 = vunpack.c.l.b16 %v311
    %v906 = vunpack.c.h.b16 %v311
    %v907 = vunpack.c.l.b16 %v312
    %v908 = vunpack.c.h.b16 %v312
    %v909 = vunpack.c.l.b16 %v313
    %v910 = vunpack.c.h.b16 %v313
    %v911 = vunpack.c.l.b16 %v314
    %v912 = vunpack.c.h.b16 %v314
    %v913 = vunpack.c.l.b16 %v315
    %v914 = vunpack.c.h.b16 %v315
    %v915 = vunpack.c.l.b16 %v316
    %v916 = vunpack.c.h.b16 %v316
    %v917 = vunpack.c.l.b16 %v317
    %v918 = vunpack.c.h.b16 %v317
    %v919 = vunpack.c.l.b16 %v318
    %v920 = vunpack.c.h.b16 %v318
    %v921 = vunpack.c.l.b16 %v319
    %v922 = vunpack.c.h.b16 %v319
    %v923 = vunpack.c.l.b16 %v320
    %v924 = vunpack.c.h.b16 %v320
    %v925 = vunpack.c.l.b16 %v321
    %v926 = vunpack.c.h.b16 %v321
    %v927 = vunpack.c.l.b16 %v322
    %v928 = vunpack.c.h.b16 %v322
    %v929 = vunpack.c.l.b16 %v323
    %v930 = vunpack.c.h.b16 %v323
    %v931 = vunpack.c.l.b16 %v324
    %v932 = vunpack.c.h.b16 %v324
    %v933 = vunpack.c.l.b16 %v325
    %v934 = vunpack.c.h.b16 %v325
    %v935 = vunpack.c.l.b16 %v326
    %v936 = vunpack.c.h.b16 %v326
    %v937 = vunpack.c.l.b16 %v327
    %v938 = vunpack.c.h.b16 %v327
    %v939 = vunpack.c.l.b16 %v328
    %v940 = vunpack.c.h.b16 %v328
    %v941 = vunpack.c.l.b16 %v329
    %v942 = vunpack.c.h.b16 %v329
    %v943 = vunpack.c.l.b16 %v330
    %v944 = vunpack.c.h.b16 %v330
    %v945 = vunpack.c.l.b16 %v331
    %v946 = vunpack.c.h.b16 %v331
    %v947 = vunpack.c.l.b16 %v332
    %v948 = vunpack.c.h.b16 %v332
    %v949 = vunpack.c.l.b16 %v333
    %v950 = vunpack.c.h.b16 %v333
    %v951 = vunpack.c.l.b16 %v334
    %v952 = vunpack.c.h.b16 %v334
    %v953 = vunpack.c.l.b16 %v335
    %v954 = vunpack.c.h.b16 %v335
    %v955 = vunpack.c.l.b16 %v336
    %v956 = vunpack.c.h.b16 %v336
    %v957 = vunpack.c.l.b16 %v337
    %v958 = vunpack.c.h.b16 %v337
    %v959 = vunpack.c.l.b16 %v338
    %v960 = vunpack.c.h.b16 %v338
    %v961 = vunpack.c.l.b16 %v339
    %v962 = vunpack.c.h.b16 %v339
    %v963 = vunpack.c.l.b16 %v340
    %v964 = vunpack.c.h.b16 %v340
    %v965 = vunpack.c.l.b16 %v341
    %v966 = vunpack.c.h.b16 %v341
    %v967 = vunpack.c.l.b16 %v342
    %v968 = vunpack.c.h.b16 %v342
    %v969 = vunpack.c.l.b16 %v343
    %v970 = vunpack.c.h.b16 %v343
    %v971 = vunpack.c.l.b16 %v344
    %v972 = vunpack.c.h.b16 %v344
    %v973 = vunpack.c.l.b16 %v345
    %v974 = vunpack.c.h.b16 %v345
    %v975 = vunpack.c.l.b16 %v346
    %v976 = vunpack.c.h.b16 %v346
    %v977 = vunpack.c.l.b16 %v347
    %v978 = vunpack.c.h.b16 %v347
    %v979 = vunpack.c.l.b16 %v348
    %v980 = vunpack.c.h.b16 %v348
    %v981 = vunpack.c.l.b16 %v349
    %v982 = vunpack.c.h.b16 %v349
    %v983 = vunpack.c.l.b16 %v350
    %v984 = vunpack.c.h.b16 %v350
    %v985 = vunpack.c.l.b16 %v351
    %v986 = vunpack.c.h.b16 %v351
    %v987 = vunpack.c.l.b16 %v352
    %v988 = vunpack.c.h.b16 %v352
    %v989 = vunpack.c.l.b16 %v353
    %v990 = vunpack.c.h.b16 %v353
    %v991 = vunpack.c.l.b16 %v354
    %v992 = vunpack.c.h.b16 %v354
    %v993 = vunpack.c.l.b16 %v355
    %v994 = vunpack.c.h.b16 %v355
    %v995 = vunpack.c.l.b16 %v356
    %v996 = vunpack.c.h.b16 %v356
    %v997 = vunpack.c.l.b16 %v357
    %v998 = vunpack.c.h.b16 %v357
    %v999 = vpack.c.b16 %v619, %v615
    %v1000 = vpack.c.b16 %v620, %v616
    %v1001 = vpack.c.b16 %v621, %v617
    %v1002 = vpack.c.b16 %v622, %v618
    %v1003 = vpack.c.b16 %v627, %v623
    %v1004 = vpack.c.b16 %v628, %v624
    %v1005 = vpack.c.b16 %v629, %v625
    %v1006 = vpack.c.b16 %v630, %v626
    %v1007 = vpack.c.b16 %v635, %v631
    %v1008 = vpack.c.b16 %v636, %v632
    %v1009 = vpack.c.b16 %v637, %v633
    %v1010 = vpack.c.b16 %v638, %v634
    %v1011 = vpack.c.b16 %v643, %v639
    %v1012 = vpack.c.b16 %v644, %v640
    %v1013 = vpack.c.b16 %v645, %v641
    %v1014 = vpack.c.b16 %v646, %v642
    %v1015 = vpack.c.b16 %v651, %v647
    %v1016 = vpack.c.b16 %v652, %v648
    %v1017 = vpack.c.b16 %v653, %v649
    %v1018 = vpack.c.b16 %v654, %v650
    %v1019 = vpack.c.b16 %v659, %v655
    %v1020 = vpack.c.b16 %v660, %v656
    %v1021 = vpack.c.b16 %v661, %v657
    %v1022 = vpack.c.b16 %v662, %v658
    %v1023 = vpack.c.b16 %v667, %v663
    %v1024 = vpack.c.b16 %v668, %v664
    %v1025 = vpack.c.b16 %v669, %v665
    %v1026 = vpack.c.b16 %v670, %v666
    %v1027 = vpack.c.b16 %v675, %v671
    %v1028 = vpack.c.b16 %v676, %v672
    %v1029 = vpack.c.b16 %v677, %v673
    %v1030 = vpack.c.b16 %v678, %v674
    %v1031 = vpack.c.b16 %v683, %v679
    %v1032 = vpack.c.b16 %v684, %v680
    %v1033 = vpack.c.b16 %v685, %v681
    %v1034 = vpack.c.b16 %v686, %v682
    %v1035 = vpack.c.b16 %v691, %v687
    %v1036 = vpack.c.b16 %v692, %v688
    %v1037 = vpack.c.b16 %v693, %v689
    %v1038 = vpack.c.b16 %v694, %v690
    %v1039 = vpack.c.b16 %v699, %v695
    %v1040 = vpack.c.b16 %v700, %v696
    %v1041 = vpack.c.b16 %v701, %v697
    %v1042 = vpack.c.b16 %v702, %v698
    %v1043 = vpack.c.b16 %v707, %v703
    %v1044 = vpack.c.b16 %v708, %v704
    %v1045 = vpack.c.b16 %v709, %v705
    %v1046 = vpack.c.b16 %v710, %v706
    %v1047 = vpack.c.b16 %v715, %v711
    %v1048 = vpack.c.b16 %v716, %v712
    %v1049 = vpack.c.b16 %v717, %v713
    %v1050 = vpack.c.b16 %v718, %v714
    %v1051 = vpack.c.b16 %v723, %v719
    %v1052 = vpack.c.b16 %v724, %v720
    %v1053 = vpack.c.b16 %v725, %v721
    %v1054 = vpack.c.b16 %v726, %v722
    %v1055 = vpack.c.b16 %v731, %v727
    %v1056 = vpack.c.b16 %v732, %v728
    %v1057 = vpack.c.b16 %v733, %v729
    %v1058 = vpack.c.b16 %v734, %v730
    %v1059 = vpack.c.b16 %v739, %v735
    %v1060 = vpack.c.b16 %v740, %v736
    %v1061 = vpack.c.b16 %v741, %v737
    %v1062 = vpack.c.b16 %v742, %v738
    %v1063 = vpack.c.b16 %v747, %v743
    %v1064 = vpack.c.b16 %v748, %v744
    %v1065 = vpack.c.b16 %v749, %v745
    %v1066 = vpack.c.b16 %v750, %v746
    %v1067 = vpack.c.b16 %v755, %v751
    %v1068 = vpack.c.b16 %v756, %v752
    %v1069 = vpack.c.b16 %v757, %v753
    %v1070 = vpack.c.b16 %v758, %v754
    %v1071 = vpack.c.b16 %v763, %v759
    %v1072 = vpack.c.b16 %v764, %v760
    %v1073 = vpack.c.b16 %v765, %v761
    %v1074 = vpack.c.b16 %v766, %v762
    %v1075 = vpack.c.b16 %v771, %v767
    %v1076 = vpack.c.b16 %v772, %v768
    %v1077 = vpack.c.b16 %v773, %v769
    %v1078 = vpack.c.b16 %v774, %v770
    %v1079 = vpack.c.b16 %v779, %v775
    %v1080 = vpack.c.b16 %v780, %v776
    %v1081 = vpack.c.b16 %v781, %v777
    %v1082 = vpack.c.b16 %v782, %v778
    %v1083 = vpack.c.b16 %v787, %v783
    %v1084 = vpack.c.b16 %v788, %v784
    %v1085 = vpack.c.b16 %v789, %v785
    %v1086 = vpack.c.b16 %v790, %v786
    %v1087 = vpack.c.b16 %v795, %v791
    %v1088 = vpack.c.b16 %v796, %v792
    %v1089 = vpack.c.b16 %v797, %v793
    %v1090 = vpack.c.b16 %v798, %v794
    %v1091 = vpack.c.b16 %v803, %v799
    %v1092 = vpack.c.b16 %v804, %v800
    %v1093 = vpack.c.b16 %v805, %v801
    %v1094 = vpack.c.b16 %v806, %v802
    %v1095 = vpack.c.b16 %v811, %v807
    %v1096 = vpack.c.b16 %v812, %v808
    %v1097 = vpack.c.b16 %v813, %v809
    %v1098 = vpack.c.b16 %v814, %v810
    %v1099 = vpack.c.b16 %v819, %v815
    %v1100 = vpack.c.b16 %v820, %v816
    %v1101 = vpack.c.b16 %v821, %v817
    %v1102 = vpack.c.b16 %v822, %v818
    %v1103 = vpack.c.b16 %v827, %v823
    %v1104 = vpack.c.b16 %v828, %v824
    %v1105 = vpack.c.b16 %v829, %v825
    %v1106 = vpack.c.b16 %v830, %v826
    %v1107 = vpack.c.b16 %v835, %v831
    %v1108 = vpack.c.b16 %v836, %v832
    %v1109 = vpack.c.b16 %v837, %v833
    %v1110 = vpack.c.b16 %v838, %v834
    %v1111 = vpack.c.b16 %v843, %v839
    %v1112 = vpack.c.b16 %v844, %v840
    %v1113 = vpack.c.b16 %v845, %v841
    %v1114 = vpack.c.b16 %v846, %v842
    %v1115 = vpack.c.b16 %v851, %v847
    %v1116 = vpack.c.b16 %v852, %v848
    %v1117 = vpack.c.b16 %v853, %v849
    %v1118 = vpack.c.b16 %v854, %v850
    %v1119 = vpack.c.b16 %v859, %v855
    %v1120 = vpack.c.b16 %v860, %v856
    %v1121 = vpack.c.b16 %v861, %v857
    %v1122 = vpack.c.b16 %v862, %v858
    %v1123 = vpack.c.b16 %v867, %v863
    %v1124 = vpack.c.b16 %v868, %v864
    %v1125 = vpack.c.b16 %v869, %v865
    %v1126 = vpack.c.b16 %v870, %v866
    %v1127 = vpack.c.b16 %v875, %v871
    %v1128 = vpack.c.b16 %v876, %v872
    %v1129 = vpack.c.b16 %v877, %v873
    %v1130 = vpack.c.b16 %v878, %v874
    %v1131 = vpack.c.b16 %v883, %v879
    %v1132 = vpack.c.b16 %v884, %v880
    %v1133 = vpack.c.b16 %v885, %v881
    %v1134 = vpack.c.b16 %v886, %v882
    %v1135 = vpack.c.b16 %v891, %v887
    %v1136 = vpack.c.b16 %v892, %v888
    %v1137 = vpack.c.b16 %v893, %v889
    %v1138 = vpack.c.b16 %v894, %v890
    %v1139 = vpack.c.b16 %v899, %v895
    %v1140 = vpack.c.b16 %v900, %v896
    %v1141 = vpack.c.b16 %v901, %v897
    %v1142 = vpack.c.b16 %v902, %v898
    %v1143 = vpack.c.b16 %v907, %v903
    %v1144 = vpack.c.b16 %v908, %v904
    %v1145 = vpack.c.b16 %v909, %v905
    %v1146 = vpack.c.b16 %v910, %v906
    %v1147 = vpack.c.b16 %v915, %v911
    %v1148 = vpack.c.b16 %v916, %v912
    %v1149 = vpack.c.b16 %v917, %v913
    %v1150 = vpack.c.b16 %v918, %v914
    %v1151 = vpack.c.b16 %v923, %v919
    %v1152 = vpack.c.b16 %v924, %v920
    %v1153 = vpack.c.b16 %v925, %v921
    %v1154 = vpack.c.b16 %v926, %v922
    %v1155 = vpack.c.b16 %v931, %v927
    %v1156 = vpack.c.b16 %v932, %v928
    %v1157 = vpack.c.b16 %v933, %v929
    %v1158 = vpack.c.b16 %v934, %v930
    %v1159 = vpack.c.b16 %v939, %v935
    %v1160 = vpack.c.b16 %v940, %v936
    %v1161 = vpack.c.b16 %v941, %v937
    %v1162 = vpack.c.b16 %v942, %v938
    %v1163 = vpack.c.b16 %v947, %v943
    %v1164 = vpack.c.b16 %v948, %v944
    %v1165 = vpack.c.b16 %v949, %v945
    %v1166 = vpack.c.b16 %v950, %v946
    %v1167 = vpack.c.b16 %v955, %v951
    %v1168 = vpack.c.b16 %v956, %v952
    %v1169 = vpack.c.b16 %v957, %v953
    %v1170 = vpack.c.b16 %v958, %v954
    %v1171 = vpack.c.b16 %v963, %v959
    %v1172 = vpack.c.b16 %v964, %v960
    %v1173 = vpack.c.b16 %v965, %v961
    %v1174 = vpack.c.b16 %v966, %v962
    %v1175 = vpack.c.b16 %v971, %v967
    %v1176 = vpack.c.b16 %v972, %v968
    %v1177 = vpack.c.b16 %v973, %v969
    %v1178 = vpack.c.b16 %v974, %v970
    %v1179 = vpack.c.b16 %v979, %v975
    %v1180 = vpack.c.b16 %v980, %v976
    %v1181 = vpack.c.b16 %v981, %v977
    %v1182 = vpack.c.b16 %v982, %v978
    %v1183 = vpack.c.b16 %v987, %v983
    %v1184 = vpack.c.b16 %v988, %v984
    %v1185 = vpack.c.b16 %v989, %v985
    %v1186 = vpack.c.b16 %v990, %v986
    %v1187 = vpack.c.b16 %v995, %v991
    %v1188 = vpack.c.b16 %v996, %v992
    %v1189 = vpack.c.b16 %v997, %v993
    %v1190 = vpack.c.b16 %v998, %v994
    %1383 = vmatprep.subr.bf16.mxu0 %v1000
    %1384 = vmatpush1.bf16.msra.mxu0 %v999
    %1385 = vmatprep.subr.bf16.mxu0 %v1004
    %1386 = vmatpush1.bf16.msra.mxu0 %v1003
    %1387 = vmatprep.subr.bf16.mxu0 %v1008
    %1388 = vmatpush1.bf16.msra.mxu0 %v1007
    %1389 = vmatprep.subr.bf16.mxu0 %v1012
    %1390 = vmatpush1.bf16.msra.mxu0 %v1011
    %1391 = vmatprep.subr.bf16.mxu0 %v1016
    %1392 = vmatpush1.bf16.msra.mxu0 %v1015
    %1393 = vmatprep.subr.bf16.mxu0 %v1020
    %1394 = vmatpush1.bf16.msra.mxu0 %v1019
    %1395 = vmatprep.subr.bf16.mxu0 %v1024
    %1396 = vmatpush1.bf16.msra.mxu0 %v1023
    %1397 = vmatprep.subr.bf16.mxu0 %v1028
    %1398 = vmatpush1.bf16.msra.mxu0 %v1027
    %1399 = vmatprep.subr.bf16.mxu0 %v1032
    %1400 = vmatpush1.bf16.msra.mxu0 %v1031
    %1401 = vmatprep.subr.bf16.mxu0 %v1036
    %1402 = vmatpush1.bf16.msra.mxu0 %v1035
    %1403 = vmatprep.subr.bf16.mxu0 %v1040
    %1404 = vmatpush1.bf16.msra.mxu0 %v1039
    %1405 = vmatprep.subr.bf16.mxu0 %v1044
    %1406 = vmatpush1.bf16.msra.mxu0 %v1043
    %1407 = vmatprep.subr.bf16.mxu0 %v1048
    %1408 = vmatpush1.bf16.msra.mxu0 %v1047
    %1409 = vmatprep.subr.bf16.mxu0 %v1052
    %1410 = vmatpush1.bf16.msra.mxu0 %v1051
    %1411 = vmatprep.subr.bf16.mxu0 %v1056
    %1412 = vmatpush1.bf16.msra.mxu0 %v1055
    %1413 = vmatprep.subr.bf16.mxu0 %v1060
    %1414 = vmatpush1.bf16.msra.mxu0 %v1059
    %1415 = vmatprep.mubr.bf16.mxu0 %v412
    %1416 = vmatmul.mubr.bf16.gmra.mrb[0].mxu0 %v411
    %v1417 = vpop.f32.mrb[0].mxu0
    %v1418 = vadd.f32 %v363, %v1417
    %v1419 = vpop.f32.mrb[0].mxu0
    %v1420 = vadd.f32 %v367, %v1419
    %v1421 = vpop.f32.mrb[0].mxu0
    %v1422 = vpop.f32.mrb[0].mxu0
    %1423 = vdwg.mxu0
    %1424 = vmatprep.subr.bf16.mxu0 %v1064
    %1425 = vmatpush1.bf16.msra.mxu0 %v1063
    %1426 = vmatprep.subr.bf16.mxu0 %v1068
    %1427 = vmatpush1.bf16.msra.mxu0 %v1067
    %1428 = vmatprep.subr.bf16.mxu0 %v1072
    %1429 = vmatpush1.bf16.msra.mxu0 %v1071
    %1430 = vmatprep.subr.bf16.mxu0 %v1076
    %1431 = vmatpush1.bf16.msra.mxu0 %v1075
    %1432 = vmatprep.subr.bf16.mxu0 %v1080
    %1433 = vmatpush1.bf16.msra.mxu0 %v1079
    %1434 = vmatprep.subr.bf16.mxu0 %v1084
    %1435 = vmatpush1.bf16.msra.mxu0 %v1083
    %1436 = vmatprep.subr.bf16.mxu0 %v1088
    %1437 = vmatpush1.bf16.msra.mxu0 %v1087
    %1438 = vmatprep.subr.bf16.mxu0 %v1092
    %1439 = vmatpush1.bf16.msra.mxu0 %v1091
    %1440 = vmatprep.subr.bf16.mxu0 %v1096
    %1441 = vmatpush1.bf16.msra.mxu0 %v1095
    %1442 = vmatprep.subr.bf16.mxu0 %v1100
    %1443 = vmatpush1.bf16.msra.mxu0 %v1099
    %1444 = vmatprep.subr.bf16.mxu0 %v1104
    %1445 = vmatpush1.bf16.msra.mxu0 %v1103
    %1446 = vmatprep.subr.bf16.mxu0 %v1108
    %1447 = vmatpush1.bf16.msra.mxu0 %v1107
    %1448 = vmatprep.subr.bf16.mxu0 %v1112
    %1449 = vmatpush1.bf16.msra.mxu0 %v1111
    %1450 = vmatprep.subr.bf16.mxu0 %v1116
    %1451 = vmatpush1.bf16.msra.mxu0 %v1115
    %1452 = vmatprep.subr.bf16.mxu0 %v1120
    %1453 = vmatpush1.bf16.msra.mxu0 %v1119
    %1454 = vmatprep.subr.bf16.mxu0 %v1124
    %1455 = vmatpush1.bf16.msra.mxu0 %v1123
    %1456 = vmatprep.mubr.bf16.mxu0 %v414
    %1457 = vmatmul.mubr.bf16.gmra.mrb[0].mxu0 %v413
    %v1458 = vpop.f32.mrb[0].mxu0
    %v1459 = vadd.f32 %v1418, %v1458
    %v1460 = vpop.f32.mrb[0].mxu0
    %v1461 = vadd.f32 %v1420, %v1460
    %v1462 = vpop.f32.mrb[0].mxu0
    %v1463 = vpop.f32.mrb[0].mxu0
    %1464 = vdwg.mxu0
    %1465 = vmatprep.subr.bf16.mxu0 %v1128
    %1466 = vmatpush1.bf16.msra.mxu0 %v1127
    %1467 = vmatprep.subr.bf16.mxu0 %v1132
    %1468 = vmatpush1.bf16.msra.mxu0 %v1131
    %1469 = vmatprep.subr.bf16.mxu0 %v1136
    %1470 = vmatpush1.bf16.msra.mxu0 %v1135
    %1471 = vmatprep.subr.bf16.mxu0 %v1140
    %1472 = vmatpush1.bf16.msra.mxu0 %v1139
    %1473 = vmatprep.subr.bf16.mxu0 %v1144
    %1474 = vmatpush1.bf16.msra.mxu0 %v1143
    %1475 = vmatprep.subr.bf16.mxu0 %v1148
    %1476 = vmatpush1.bf16.msra.mxu0 %v1147
    %1477 = vmatprep.subr.bf16.mxu0 %v1152
    %1478 = vmatpush1.bf16.msra.mxu0 %v1151
    %1479 = vmatprep.subr.bf16.mxu0 %v1156
    %1480 = vmatpush1.bf16.msra.mxu0 %v1155
    %1481 = vmatprep.subr.bf16.mxu0 %v1160
    %1482 = vmatpush1.bf16.msra.mxu0 %v1159
    %1483 = vmatprep.subr.bf16.mxu0 %v1164
    %1484 = vmatpush1.bf16.msra.mxu0 %v1163
    %1485 = vmatprep.subr.bf16.mxu0 %v1168
    %1486 = vmatpush1.bf16.msra.mxu0 %v1167
    %1487 = vmatprep.subr.bf16.mxu0 %v1172
    %1488 = vmatpush1.bf16.msra.mxu0 %v1171
    %1489 = vmatprep.subr.bf16.mxu0 %v1176
    %1490 = vmatpush1.bf16.msra.mxu0 %v1175
    %1491 = vmatprep.subr.bf16.mxu0 %v1180
    %1492 = vmatpush1.bf16.msra.mxu0 %v1179
    %1493 = vmatprep.subr.bf16.mxu0 %v1184
    %1494 = vmatpush1.bf16.msra.mxu0 %v1183
    %1495 = vmatprep.subr.bf16.mxu0 %v1188
    %1496 = vmatpush1.bf16.msra.mxu0 %v1187
    %1497 = vmatprep.mubr.bf16.mxu0 %v416
    %1498 = vmatmul.mubr.bf16.gmra.mrb[0].mxu0 %v415
    %v1499 = vpop.f32.mrb[0].mxu0
    %v1500 = vadd.f32 %v1459, %v1499
    %v1501 = vpop.f32.mrb[0].mxu0
    %v1502 = vadd.f32 %v1461, %v1501
    %v1503 = vpop.f32.mrb[0].mxu0
    %v1504 = vpop.f32.mrb[0].mxu0
    %1505 = vdwg.mxu0
    %1506 = vmatprep.subr.bf16.mxu0 %v1002
    %1507 = vmatpush1.bf16.msra.mxu0 %v1001
    %1508 = vmatprep.subr.bf16.mxu0 %v1006
    %1509 = vmatpush1.bf16.msra.mxu0 %v1005
    %1510 = vmatprep.subr.bf16.mxu0 %v1010
    %1511 = vmatpush1.bf16.msra.mxu0 %v1009
    %1512 = vmatprep.subr.bf16.mxu0 %v1014
    %1513 = vmatpush1.bf16.msra.mxu0 %v1013
    %1514 = vmatprep.subr.bf16.mxu0 %v1018
    %1515 = vmatpush1.bf16.msra.mxu0 %v1017
    %1516 = vmatprep.subr.bf16.mxu0 %v1022
    %1517 = vmatpush1.bf16.msra.mxu0 %v1021
    %1518 = vmatprep.subr.bf16.mxu0 %v1026
    %1519 = vmatpush1.bf16.msra.mxu0 %v1025
    %1520 = vmatprep.subr.bf16.mxu0 %v1030
    %1521 = vmatpush1.bf16.msra.mxu0 %v1029
    %1522 = vmatprep.subr.bf16.mxu0 %v1034
    %1523 = vmatpush1.bf16.msra.mxu0 %v1033
    %1524 = vmatprep.subr.bf16.mxu0 %v1038
    %1525 = vmatpush1.bf16.msra.mxu0 %v1037
    %1526 = vmatprep.subr.bf16.mxu0 %v1042
    %1527 = vmatpush1.bf16.msra.mxu0 %v1041
    %1528 = vmatprep.subr.bf16.mxu0 %v1046
    %1529 = vmatpush1.bf16.msra.mxu0 %v1045
    %1530 = vmatprep.subr.bf16.mxu0 %v1050
    %1531 = vmatpush1.bf16.msra.mxu0 %v1049
    %1532 = vmatprep.subr.bf16.mxu0 %v1054
    %1533 = vmatpush1.bf16.msra.mxu0 %v1053
    %1534 = vmatprep.subr.bf16.mxu0 %v1058
    %1535 = vmatpush1.bf16.msra.mxu0 %v1057
    %1536 = vmatprep.subr.bf16.mxu0 %v1062
    %1537 = vmatpush1.bf16.msra.mxu0 %v1061
    %1538 = vmatprep.mubr.bf16.mxu0 %v412
    %1539 = vmatmul.mubr.bf16.gmra.mrb[0].mxu0 %v411
    %v1540 = vpop.f32.mrb[0].mxu0
    %v1541 = vadd.f32 %v371, %v1540
    %v1542 = vpop.f32.mrb[0].mxu0
    %v1543 = vadd.f32 %v375, %v1542
    %v1544 = vpop.f32.mrb[0].mxu0
    %v1545 = vpop.f32.mrb[0].mxu0
    %1546 = vdwg.mxu0
    %1547 = vmatprep.subr.bf16.mxu0 %v1066
    %1548 = vmatpush1.bf16.msra.mxu0 %v1065
    %1549 = vmatprep.subr.bf16.mxu0 %v1070
    %1550 = vmatpush1.bf16.msra.mxu0 %v1069
    %1551 = vmatprep.subr.bf16.mxu0 %v1074
    %1552 = vmatpush1.bf16.msra.mxu0 %v1073
    %1553 = vmatprep.subr.bf16.mxu0 %v1078
    %1554 = vmatpush1.bf16.msra.mxu0 %v1077
    %1555 = vmatprep.subr.bf16.mxu0 %v1082
    %1556 = vmatpush1.bf16.msra.mxu0 %v1081
    %1557 = vmatprep.subr.bf16.mxu0 %v1086
    %1558 = vmatpush1.bf16.msra.mxu0 %v1085
    %1559 = vmatprep.subr.bf16.mxu0 %v1090
    %1560 = vmatpush1.bf16.msra.mxu0 %v1089
    %1561 = vmatprep.subr.bf16.mxu0 %v1094
    %1562 = vmatpush1.bf16.msra.mxu0 %v1093
    %1563 = vmatprep.subr.bf16.mxu0 %v1098
    %1564 = vmatpush1.bf16.msra.mxu0 %v1097
    %1565 = vmatprep.subr.bf16.mxu0 %v1102
    %1566 = vmatpush1.bf16.msra.mxu0 %v1101
    %1567 = vmatprep.subr.bf16.mxu0 %v1106
    %1568 = vmatpush1.bf16.msra.mxu0 %v1105
    %1569 = vmatprep.subr.bf16.mxu0 %v1110
    %1570 = vmatpush1.bf16.msra.mxu0 %v1109
    %1571 = vmatprep.subr.bf16.mxu0 %v1114
    %1572 = vmatpush1.bf16.msra.mxu0 %v1113
    %1573 = vmatprep.subr.bf16.mxu0 %v1118
    %1574 = vmatpush1.bf16.msra.mxu0 %v1117
    %1575 = vmatprep.subr.bf16.mxu0 %v1122
    %1576 = vmatpush1.bf16.msra.mxu0 %v1121
    %1577 = vmatprep.subr.bf16.mxu0 %v1126
    %1578 = vmatpush1.bf16.msra.mxu0 %v1125
    %1579 = vmatprep.mubr.bf16.mxu0 %v414
    %1580 = vmatmul.mubr.bf16.gmra.mrb[0].mxu0 %v413
    %v1581 = vpop.f32.mrb[0].mxu0
    %v1582 = vadd.f32 %v1541, %v1581
    %v1583 = vpop.f32.mrb[0].mxu0
    %v1584 = vadd.f32 %v1543, %v1583
    %v1585 = vpop.f32.mrb[0].mxu0
    %v1586 = vpop.f32.mrb[0].mxu0
    %1587 = vdwg.mxu0
    %1588 = vmatprep.subr.bf16.mxu0 %v1130
    %1589 = vmatpush1.bf16.msra.mxu0 %v1129
    %1590 = vmatprep.subr.bf16.mxu0 %v1134
    %1591 = vmatpush1.bf16.msra.mxu0 %v1133
    %1592 = vmatprep.subr.bf16.mxu0 %v1138
    %1593 = vmatpush1.bf16.msra.mxu0 %v1137
    %1594 = vmatprep.subr.bf16.mxu0 %v1142
    %1595 = vmatpush1.bf16.msra.mxu0 %v1141
    %1596 = vmatprep.subr.bf16.mxu0 %v1146
    %1597 = vmatpush1.bf16.msra.mxu0 %v1145
    %1598 = vmatprep.subr.bf16.mxu0 %v1150
    %1599 = vmatpush1.bf16.msra.mxu0 %v1149
    %1600 = vmatprep.subr.bf16.mxu0 %v1154
    %1601 = vmatpush1.bf16.msra.mxu0 %v1153
    %1602 = vmatprep.subr.bf16.mxu0 %v1158
    %1603 = vmatpush1.bf16.msra.mxu0 %v1157
    %1604 = vmatprep.subr.bf16.mxu0 %v1162
    %1605 = vmatpush1.bf16.msra.mxu0 %v1161
    %1606 = vmatprep.subr.bf16.mxu0 %v1166
    %1607 = vmatpush1.bf16.msra.mxu0 %v1165
    %1608 = vmatprep.subr.bf16.mxu0 %v1170
    %1609 = vmatpush1.bf16.msra.mxu0 %v1169
    %1610 = vmatprep.subr.bf16.mxu0 %v1174
    %1611 = vmatpush1.bf16.msra.mxu0 %v1173
    %1612 = vmatprep.subr.bf16.mxu0 %v1178
    %1613 = vmatpush1.bf16.msra.mxu0 %v1177
    %1614 = vmatprep.subr.bf16.mxu0 %v1182
    %1615 = vmatpush1.bf16.msra.mxu0 %v1181
    %1616 = vmatprep.subr.bf16.mxu0 %v1186
    %1617 = vmatpush1.bf16.msra.mxu0 %v1185
    %1618 = vmatprep.subr.bf16.mxu0 %v1190
    %1619 = vmatpush1.bf16.msra.mxu0 %v1189
    %1620 = vmatprep.mubr.bf16.mxu0 %v416
    %1621 = vmatmul.mubr.bf16.gmra.mrb[0].mxu0 %v415
    %v1622 = vpop.f32.mrb[0].mxu0
    %v1623 = vadd.f32 %v1582, %v1622
    %v1624 = vpop.f32.mrb[0].mxu0
    %v1625 = vadd.f32 %v1584, %v1624
    %v1626 = vpop.f32.mrb[0].mxu0
    %v1627 = vpop.f32.mrb[0].mxu0
    %1628 = vdwg.mxu0
    %v1629 = vmax.f32 %v1500, 0.0
    %v1630 = vmax.f32 %v1502, 0.0
    %v1631 = vmax.f32 %v1623, 0.0
    %v1632 = vmax.f32 %v1625, 0.0
    %v1633 = vpack.c.bf16 %v1629, %v1629
    %v1634 = vpack.c.bf16 %v1630, %v1630
    %v1635 = vpack.c.bf16 %v1631, %v1631
    %v1636 = vpack.c.bf16 %v1632, %v1632
    %v1637 = vld [vmem:[%s4] sm:$0xff]
    %v1638 = vld [vmem:[%s4 + $0x8] sm:$0xff]
    %v1639 = vld [vmem:[%s4 + $0x10] sm:$0xff]
    %v1640 = vld [vmem:[%s4 + $0x18] sm:$0xff]
    %v1641 = vld [vmem:[%s4 + $0x20] sm:$0xff]
    %v1642 = vld [vmem:[%s4 + $0x28] sm:$0xff]
    %v1643 = vld [vmem:[%s4 + $0x30] sm:$0xff]
    %v1644 = vld [vmem:[%s4 + $0x38] sm:$0xff]
    %v1645 = vld [vmem:[%s4 + $0x40] sm:$0xff]
    %v1646 = vld [vmem:[%s4 + $0x48] sm:$0xff]
    %v1647 = vld [vmem:[%s4 + $0x50] sm:$0xff]
    %v1648 = vld [vmem:[%s4 + $0x58] sm:$0xff]
    %v1649 = vld [vmem:[%s4 + $0x60] sm:$0xff]
    %v1650 = vld [vmem:[%s4 + $0x68] sm:$0xff]
    %v1651 = vld [vmem:[%s4 + $0x70] sm:$0xff]
    %v1652 = vld [vmem:[%s4 + $0x78] sm:$0xff]
    %v1653 = vld [vmem:[%s4 + $0x80] sm:$0xff]
    %v1654 = vld [vmem:[%s4 + $0x88] sm:$0xff]
    %v1655 = vld [vmem:[%s4 + $0x90] sm:$0xff]
    %v1656 = vld [vmem:[%s4 + $0x98] sm:$0xff]
    %v1657 = vld [vmem:[%s4 + $0xa0] sm:$0xff]
    %v1658 = vld [vmem:[%s4 + $0xa8] sm:$0xff]
    %v1659 = vld [vmem:[%s4 + $0xb0] sm:$0xff]
    %v1660 = vld [vmem:[%s4 + $0xb8] sm:$0xff]
    %v1661 = vld [vmem:[%s4 + $0xc0] sm:$0xff]
    %v1662 = vld [vmem:[%s4 + $0xc8] sm:$0xff]
    %v1663 = vld [vmem:[%s4 + $0xd0] sm:$0xff]
    %v1664 = vld [vmem:[%s4 + $0xd8] sm:$0xff]
    %v1665 = vld [vmem:[%s4 + $0xe0] sm:$0xff]
    %v1666 = vld [vmem:[%s4 + $0xe8] sm:$0xff]
    %v1667 = vld [vmem:[%s4 + $0xf0] sm:$0xff]
    %v1668 = vld [vmem:[%s4 + $0xf8] sm:$0xff]
    %v1669 = vld [vmem:[%s4 + $0x100] sm:$0xff]
    %v1670 = vld [vmem:[%s4 + $0x108] sm:$0xff]
    %v1671 = vld [vmem:[%s4 + $0x110] sm:$0xff]
    %v1672 = vld [vmem:[%s4 + $0x118] sm:$0xff]
    %v1673 = vld [vmem:[%s4 + $0x120] sm:$0xff]
    %v1674 = vld [vmem:[%s4 + $0x128] sm:$0xff]
    %v1675 = vld [vmem:[%s4 + $0x130] sm:$0xff]
    %v1676 = vld [vmem:[%s4 + $0x138] sm:$0xff]
    %v1677 = vld [vmem:[%s4 + $0x140] sm:$0xff]
    %v1678 = vld [vmem:[%s4 + $0x148] sm:$0xff]
    %v1679 = vld [vmem:[%s4 + $0x150] sm:$0xff]
    %v1680 = vld [vmem:[%s4 + $0x158] sm:$0xff]
    %v1681 = vld [vmem:[%s4 + $0x160] sm:$0xff]
    %v1682 = vld [vmem:[%s4 + $0x168] sm:$0xff]
    %v1683 = vld [vmem:[%s4 + $0x170] sm:$0xff]
    %v1684 = vld [vmem:[%s4 + $0x178] sm:$0xff]
    %v1685 = vld [vmem:[%s4 + $0x180] sm:$0xff]
    %v1686 = vld [vmem:[%s4 + $0x188] sm:$0xff]
    %v1687 = vld [vmem:[%s4 + $0x190] sm:$0xff]
    %v1688 = vld [vmem:[%s4 + $0x198] sm:$0xff]
    %v1689 = vld [vmem:[%s4 + $0x1a0] sm:$0xff]
    %v1690 = vld [vmem:[%s4 + $0x1a8] sm:$0xff]
    %v1691 = vld [vmem:[%s4 + $0x1b0] sm:$0xff]
    %v1692 = vld [vmem:[%s4 + $0x1b8] sm:$0xff]
    %v1693 = vld [vmem:[%s4 + $0x1c0] sm:$0xff]
    %v1694 = vld [vmem:[%s4 + $0x1c8] sm:$0xff]
    %v1695 = vld [vmem:[%s4 + $0x1d0] sm:$0xff]
    %v1696 = vld [vmem:[%s4 + $0x1d8] sm:$0xff]
    %v1697 = vld [vmem:[%s4 + $0x1e0] sm:$0xff]
    %v1698 = vld [vmem:[%s4 + $0x1e8] sm:$0xff]
    %v1699 = vld [vmem:[%s4 + $0x1f0] sm:$0xff]
    %v1700 = vld [vmem:[%s4 + $0x1f8] sm:$0xff]
    %v1701 = vld [vmem:[%s5] sm:$0x3]
    %v1703 = vlaneseq
    %v1704 = vshrl.u32 %v1703, 7
    %v1705 = vsub.s32 0, %v1704
    %v1706 = vrot.slane %v1701, %v1705
    %v1707 = vlaneseq
    %v1708 = vshrl.u32 %v1707, 7
    %v1709 = vsub.s32 1, %v1708
    %v1710 = vrot.slane %v1701, %v1709
    %v1777 = vunpack.c.l.b16 %v1637
    %v1778 = vunpack.c.h.b16 %v1637
    %v1779 = vunpack.c.l.b16 %v1638
    %v1780 = vunpack.c.h.b16 %v1638
    %v1781 = vunpack.c.l.b16 %v1639
    %v1782 = vunpack.c.h.b16 %v1639
    %v1783 = vunpack.c.l.b16 %v1640
    %v1784 = vunpack.c.h.b16 %v1640
    %v1785 = vunpack.c.l.b16 %v1641
    %v1786 = vunpack.c.h.b16 %v1641
    %v1787 = vunpack.c.l.b16 %v1642
    %v1788 = vunpack.c.h.b16 %v1642
    %v1789 = vunpack.c.l.b16 %v1643
    %v1790 = vunpack.c.h.b16 %v1643
    %v1791 = vunpack.c.l.b16 %v1644
    %v1792 = vunpack.c.h.b16 %v1644
    %v1793 = vunpack.c.l.b16 %v1645
    %v1794 = vunpack.c.h.b16 %v1645
    %v1795 = vunpack.c.l.b16 %v1646
    %v1796 = vunpack.c.h.b16 %v1646
    %v1797 = vunpack.c.l.b16 %v1647
    %v1798 = vunpack.c.h.b16 %v1647
    %v1799 = vunpack.c.l.b16 %v1648
    %v1800 = vunpack.c.h.b16 %v1648
    %v1801 = vunpack.c.l.b16 %v1649
    %v1802 = vunpack.c.h.b16 %v1649
    %v1803 = vunpack.c.l.b16 %v1650
    %v1804 = vunpack.c.h.b16 %v1650
    %v1805 = vunpack.c.l.b16 %v1651
    %v1806 = vunpack.c.h.b16 %v1651
    %v1807 = vunpack.c.l.b16 %v1652
    %v1808 = vunpack.c.h.b16 %v1652
    %v1809 = vunpack.c.l.b16 %v1653
    %v1810 = vunpack.c.h.b16 %v1653
    %v1811 = vunpack.c.l.b16 %v1654
    %v1812 = vunpack.c.h.b16 %v1654
    %v1813 = vunpack.c.l.b16 %v1655
    %v1814 = vunpack.c.h.b16 %v1655
    %v1815 = vunpack.c.l.b16 %v1656
    %v1816 = vunpack.c.h.b16 %v1656
    %v1817 = vunpack.c.l.b16 %v1657
    %v1818 = vunpack.c.h.b16 %v1657
    %v1819 = vunpack.c.l.b16 %v1658
    %v1820 = vunpack.c.h.b16 %v1658
    %v1821 = vunpack.c.l.b16 %v1659
    %v1822 = vunpack.c.h.b16 %v1659
    %v1823 = vunpack.c.l.b16 %v1660
    %v1824 = vunpack.c.h.b16 %v1660
    %v1825 = vunpack.c.l.b16 %v1661
    %v1826 = vunpack.c.h.b16 %v1661
    %v1827 = vunpack.c.l.b16 %v1662
    %v1828 = vunpack.c.h.b16 %v1662
    %v1829 = vunpack.c.l.b16 %v1663
    %v1830 = vunpack.c.h.b16 %v1663
    %v1831 = vunpack.c.l.b16 %v1664
    %v1832 = vunpack.c.h.b16 %v1664
    %v1833 = vunpack.c.l.b16 %v1665
    %v1834 = vunpack.c.h.b16 %v1665
    %v1835 = vunpack.c.l.b16 %v1666
    %v1836 = vunpack.c.h.b16 %v1666
    %v1837 = vunpack.c.l.b16 %v1667
    %v1838 = vunpack.c.h.b16 %v1667
    %v1839 = vunpack.c.l.b16 %v1668
    %v1840 = vunpack.c.h.b16 %v1668
    %v1841 = vunpack.c.l.b16 %v1669
    %v1842 = vunpack.c.h.b16 %v1669
    %v1843 = vunpack.c.l.b16 %v1670
    %v1844 = vunpack.c.h.b16 %v1670
    %v1845 = vunpack.c.l.b16 %v1671
    %v1846 = vunpack.c.h.b16 %v1671
    %v1847 = vunpack.c.l.b16 %v1672
    %v1848 = vunpack.c.h.b16 %v1672
    %v1849 = vunpack.c.l.b16 %v1673
    %v1850 = vunpack.c.h.b16 %v1673
    %v1851 = vunpack.c.l.b16 %v1674
    %v1852 = vunpack.c.h.b16 %v1674
    %v1853 = vunpack.c.l.b16 %v1675
    %v1854 = vunpack.c.h.b16 %v1675
    %v1855 = vunpack.c.l.b16 %v1676
    %v1856 = vunpack.c.h.b16 %v1676
    %v1857 = vunpack.c.l.b16 %v1677
    %v1858 = vunpack.c.h.b16 %v1677
    %v1859 = vunpack.c.l.b16 %v1678
    %v1860 = vunpack.c.h.b16 %v1678
    %v1861 = vunpack.c.l.b16 %v1679
    %v1862 = vunpack.c.h.b16 %v1679
    %v1863 = vunpack.c.l.b16 %v1680
    %v1864 = vunpack.c.h.b16 %v1680
    %v1865 = vunpack.c.l.b16 %v1681
    %v1866 = vunpack.c.h.b16 %v1681
    %v1867 = vunpack.c.l.b16 %v1682
    %v1868 = vunpack.c.h.b16 %v1682
    %v1869 = vunpack.c.l.b16 %v1683
    %v1870 = vunpack.c.h.b16 %v1683
    %v1871 = vunpack.c.l.b16 %v1684
    %v1872 = vunpack.c.h.b16 %v1684
    %v1873 = vunpack.c.l.b16 %v1685
    %v1874 = vunpack.c.h.b16 %v1685
    %v1875 = vunpack.c.l.b16 %v1686
    %v1876 = vunpack.c.h.b16 %v1686
    %v1877 = vunpack.c.l.b16 %v1687
    %v1878 = vunpack.c.h.b16 %v1687
    %v1879 = vunpack.c.l.b16 %v1688
    %v1880 = vunpack.c.h.b16 %v1688
    %v1881 = vunpack.c.l.b16 %v1689
    %v1882 = vunpack.c.h.b16 %v1689
    %v1883 = vunpack.c.l.b16 %v1690
    %v1884 = vunpack.c.h.b16 %v1690
    %v1885 = vunpack.c.l.b16 %v1691
    %v1886 = vunpack.c.h.b16 %v1691
    %v1887 = vunpack.c.l.b16 %v1692
    %v1888 = vunpack.c.h.b16 %v1692
    %v1889 = vunpack.c.l.b16 %v1693
    %v1890 = vunpack.c.h.b16 %v1693
    %v1891 = vunpack.c.l.b16 %v1694
    %v1892 = vunpack.c.h.b16 %v1694
    %v1893 = vunpack.c.l.b16 %v1695
    %v1894 = vunpack.c.h.b16 %v1695
    %v1895 = vunpack.c.l.b16 %v1696
    %v1896 = vunpack.c.h.b16 %v1696
    %v1897 = vunpack.c.l.b16 %v1697
    %v1898 = vunpack.c.h.b16 %v1697
    %v1899 = vunpack.c.l.b16 %v1698
    %v1900 = vunpack.c.h.b16 %v1698
    %v1901 = vunpack.c.l.b16 %v1699
    %v1902 = vunpack.c.h.b16 %v1699
    %v1903 = vunpack.c.l.b16 %v1700
    %v1904 = vunpack.c.h.b16 %v1700
    %v1905 = vpack.c.b16 %v1779, %v1777
    %v1906 = vpack.c.b16 %v1780, %v1778
    %v1907 = vpack.c.b16 %v1783, %v1781
    %v1908 = vpack.c.b16 %v1784, %v1782
    %v1909 = vpack.c.b16 %v1787, %v1785
    %v1910 = vpack.c.b16 %v1788, %v1786
    %v1911 = vpack.c.b16 %v1791, %v1789
    %v1912 = vpack.c.b16 %v1792, %v1790
    %v1913 = vpack.c.b16 %v1795, %v1793
    %v1914 = vpack.c.b16 %v1796, %v1794
    %v1915 = vpack.c.b16 %v1799, %v1797
    %v1916 = vpack.c.b16 %v1800, %v1798
    %v1917 = vpack.c.b16 %v1803, %v1801
    %v1918 = vpack.c.b16 %v1804, %v1802
    %v1919 = vpack.c.b16 %v1807, %v1805
    %v1920 = vpack.c.b16 %v1808, %v1806
    %v1921 = vpack.c.b16 %v1811, %v1809
    %v1922 = vpack.c.b16 %v1812, %v1810
    %v1923 = vpack.c.b16 %v1815, %v1813
    %v1924 = vpack.c.b16 %v1816, %v1814
    %v1925 = vpack.c.b16 %v1819, %v1817
    %v1926 = vpack.c.b16 %v1820, %v1818
    %v1927 = vpack.c.b16 %v1823, %v1821
    %v1928 = vpack.c.b16 %v1824, %v1822
    %v1929 = vpack.c.b16 %v1827, %v1825
    %v1930 = vpack.c.b16 %v1828, %v1826
    %v1931 = vpack.c.b16 %v1831, %v1829
    %v1932 = vpack.c.b16 %v1832, %v1830
    %v1933 = vpack.c.b16 %v1835, %v1833
    %v1934 = vpack.c.b16 %v1836, %v1834
    %v1935 = vpack.c.b16 %v1839, %v1837
    %v1936 = vpack.c.b16 %v1840, %v1838
    %v1937 = vpack.c.b16 %v1843, %v1841
    %v1938 = vpack.c.b16 %v1844, %v1842
    %v1939 = vpack.c.b16 %v1847, %v1845
    %v1940 = vpack.c.b16 %v1848, %v1846
    %v1941 = vpack.c.b16 %v1851, %v1849
    %v1942 = vpack.c.b16 %v1852, %v1850
    %v1943 = vpack.c.b16 %v1855, %v1853
    %v1944 = vpack.c.b16 %v1856, %v1854
    %v1945 = vpack.c.b16 %v1859, %v1857
    %v1946 = vpack.c.b16 %v1860, %v1858
    %v1947 = vpack.c.b16 %v1863, %v1861
    %v1948 = vpack.c.b16 %v1864, %v1862
    %v1949 = vpack.c.b16 %v1867, %v1865
    %v1950 = vpack.c.b16 %v1868, %v1866
    %v1951 = vpack.c.b16 %v1871, %v1869
    %v1952 = vpack.c.b16 %v1872, %v1870
    %v1953 = vpack.c.b16 %v1875, %v1873
    %v1954 = vpack.c.b16 %v1876, %v1874
    %v1955 = vpack.c.b16 %v1879, %v1877
    %v1956 = vpack.c.b16 %v1880, %v1878
    %v1957 = vpack.c.b16 %v1883, %v1881
    %v1958 = vpack.c.b16 %v1884, %v1882
    %v1959 = vpack.c.b16 %v1887, %v1885
    %v1960 = vpack.c.b16 %v1888, %v1886
    %v1961 = vpack.c.b16 %v1891, %v1889
    %v1962 = vpack.c.b16 %v1892, %v1890
    %v1963 = vpack.c.b16 %v1895, %v1893
    %v1964 = vpack.c.b16 %v1896, %v1894
    %v1965 = vpack.c.b16 %v1899, %v1897
    %v1966 = vpack.c.b16 %v1900, %v1898
    %v1967 = vpack.c.b16 %v1903, %v1901
    %v1968 = vpack.c.b16 %v1904, %v1902
    %2033 = vmatprep.subr.bf16.mxu0 %v1906
    %2034 = vmatpush1.bf16.msra.mxu0 %v1905
    %2035 = vmatprep.subr.bf16.mxu0 %v1908
    %2036 = vmatpush1.bf16.msra.mxu0 %v1907
    %2037 = vmatprep.subr.bf16.mxu0 %v1910
    %2038 = vmatpush1.bf16.msra.mxu0 %v1909
    %2039 = vmatprep.subr.bf16.mxu0 %v1912
    %2040 = vmatpush1.bf16.msra.mxu0 %v1911
    %2041 = vmatprep.subr.bf16.mxu0 %v1914
    %2042 = vmatpush1.bf16.msra.mxu0 %v1913
    %2043 = vmatprep.subr.bf16.mxu0 %v1916
    %2044 = vmatpush1.bf16.msra.mxu0 %v1915
    %2045 = vmatprep.subr.bf16.mxu0 %v1918
    %2046 = vmatpush1.bf16.msra.mxu0 %v1917
    %2047 = vmatprep.subr.bf16.mxu0 %v1920
    %2048 = vmatpush1.bf16.msra.mxu0 %v1919
    %2049 = vmatprep.subr.bf16.mxu0 %v1922
    %2050 = vmatpush1.bf16.msra.mxu0 %v1921
    %2051 = vmatprep.subr.bf16.mxu0 %v1924
    %2052 = vmatpush1.bf16.msra.mxu0 %v1923
    %2053 = vmatprep.subr.bf16.mxu0 %v1926
    %2054 = vmatpush1.bf16.msra.mxu0 %v1925
    %2055 = vmatprep.subr.bf16.mxu0 %v1928
    %2056 = vmatpush1.bf16.msra.mxu0 %v1927
    %2057 = vmatprep.subr.bf16.mxu0 %v1930
    %2058 = vmatpush1.bf16.msra.mxu0 %v1929
    %2059 = vmatprep.subr.bf16.mxu0 %v1932
    %2060 = vmatpush1.bf16.msra.mxu0 %v1931
    %2061 = vmatprep.subr.bf16.mxu0 %v1934
    %2062 = vmatpush1.bf16.msra.mxu0 %v1933
    %2063 = vmatprep.subr.bf16.mxu0 %v1936
    %2064 = vmatpush1.bf16.msra.mxu0 %v1935
    %2065 = vmatprep.mubr.bf16.mxu0 %v1634
    %2066 = vmatmul.mubr.bf16.gmra.mrb[0].mxu0 %v1633
    %v2067 = vpop.f32.mrb[0].mxu0
    %v2068 = vadd.f32 %v1706, %v2067
    %v2069 = vpop.f32.mrb[0].mxu0
    %v2070 = vadd.f32 %v1710, %v2069
    %v2071 = vpop.f32.mrb[0].mxu0
    %v2072 = vpop.f32.mrb[0].mxu0
    %2073 = vdwg.mxu0
    %2074 = vmatprep.subr.bf16.mxu0 %v1938
    %2075 = vmatpush1.bf16.msra.mxu0 %v1937
    %2076 = vmatprep.subr.bf16.mxu0 %v1940
    %2077 = vmatpush1.bf16.msra.mxu0 %v1939
    %2078 = vmatprep.subr.bf16.mxu0 %v1942
    %2079 = vmatpush1.bf16.msra.mxu0 %v1941
    %2080 = vmatprep.subr.bf16.mxu0 %v1944
    %2081 = vmatpush1.bf16.msra.mxu0 %v1943
    %2082 = vmatprep.subr.bf16.mxu0 %v1946
    %2083 = vmatpush1.bf16.msra.mxu0 %v1945
    %2084 = vmatprep.subr.bf16.mxu0 %v1948
    %2085 = vmatpush1.bf16.msra.mxu0 %v1947
    %2086 = vmatprep.subr.bf16.mxu0 %v1950
    %2087 = vmatpush1.bf16.msra.mxu0 %v1949
    %2088 = vmatprep.subr.bf16.mxu0 %v1952
    %2089 = vmatpush1.bf16.msra.mxu0 %v1951
    %2090 = vmatprep.subr.bf16.mxu0 %v1954
    %2091 = vmatpush1.bf16.msra.mxu0 %v1953
    %2092 = vmatprep.subr.bf16.mxu0 %v1956
    %2093 = vmatpush1.bf16.msra.mxu0 %v1955
    %2094 = vmatprep.subr.bf16.mxu0 %v1958
    %2095 = vmatpush1.bf16.msra.mxu0 %v1957
    %2096 = vmatprep.subr.bf16.mxu0 %v1960
    %2097 = vmatpush1.bf16.msra.mxu0 %v1959
    %2098 = vmatprep.subr.bf16.mxu0 %v1962
    %2099 = vmatpush1.bf16.msra.mxu0 %v1961
    %2100 = vmatprep.subr.bf16.mxu0 %v1964
    %2101 = vmatpush1.bf16.msra.mxu0 %v1963
    %2102 = vmatprep.subr.bf16.mxu0 %v1966
    %2103 = vmatpush1.bf16.msra.mxu0 %v1965
    %2104 = vmatprep.subr.bf16.mxu0 %v1968
    %2105 = vmatpush1.bf16.msra.mxu0 %v1967
    %2106 = vmatprep.mubr.bf16.mxu0 %v1636
    %2107 = vmatmul.mubr.bf16.gmra.mrb[0].mxu0 %v1635
    %v2108 = vpop.f32.mrb[0].mxu0
    %v2109 = vadd.f32 %v2068, %v2108
    %v2110 = vpop.f32.mrb[0].mxu0
    %v2111 = vadd.f32 %v2070, %v2110
    %v2112 = vpop.f32.mrb[0].mxu0
    %v2113 = vpop.f32.mrb[0].mxu0
    %2114 = vdwg.mxu0
    %v2115 = vmax.f32 %v2109, 0.0
    %v2116 = vmax.f32 %v2111, 0.0
    %v2117 = vpack.c.bf16 %v2115, %v2115
    %v2118 = vpack.c.bf16 %v2116, %v2116
    %v2119 = vld [vmem:[%s6] sm:$0xf]
    %v2120 = vld [vmem:[%s6 + $0x4] sm:$0xf]
    %v2121 = vld [vmem:[%s6 + $0x8] sm:$0xf]
    %v2122 = vld [vmem:[%s6 + $0xc] sm:$0xf]
    %v2123 = vld [vmem:[%s6 + $0x10] sm:$0xf]
    %v2124 = vld [vmem:[%s6 + $0x14] sm:$0xf]
    %v2125 = vld [vmem:[%s6 + $0x18] sm:$0xf]
    %v2126 = vld [vmem:[%s6 + $0x1c] sm:$0xf]
    %v2127 = vld [vmem:[%s6 + $0x20] sm:$0xf]
    %v2128 = vld [vmem:[%s6 + $0x24] sm:$0xf]
    %v2129 = vld [vmem:[%s6 + $0x28] sm:$0xf]
    %v2130 = vld [vmem:[%s6 + $0x2c] sm:$0xf]
    %v2131 = vld [vmem:[%s6 + $0x30] sm:$0xf]
    %v2132 = vld [vmem:[%s6 + $0x34] sm:$0xf]
    %v2133 = vld [vmem:[%s6 + $0x38] sm:$0xf]
    %v2134 = vld [vmem:[%s6 + $0x3c] sm:$0xf]
    %v2135 = vld [vmem:[%s6 + $0x40] sm:$0xf]
    %v2136 = vld [vmem:[%s6 + $0x44] sm:$0xf]
    %v2137 = vld [vmem:[%s6 + $0x48] sm:$0xf]
    %v2138 = vld [vmem:[%s6 + $0x4c] sm:$0xf]
    %v2139 = vld [vmem:[%s6 + $0x50] sm:$0xf]
    %v2140 = vld [vmem:[%s6 + $0x54] sm:$0xf]
    %v2141 = vld [vmem:[%s6 + $0x58] sm:$0xf]
    %v2142 = vld [vmem:[%s6 + $0x5c] sm:$0xf]
    %v2143 = vld [vmem:[%s6 + $0x60] sm:$0xf]
    %v2144 = vld [vmem:[%s6 + $0x64] sm:$0xf]
    %v2145 = vld [vmem:[%s6 + $0x68] sm:$0xf]
    %v2146 = vld [vmem:[%s6 + $0x6c] sm:$0xf]
    %v2147 = vld [vmem:[%s6 + $0x70] sm:$0xf]
    %v2148 = vld [vmem:[%s6 + $0x74] sm:$0xf]
    %v2149 = vld [vmem:[%s6 + $0x78] sm:$0xf]
    %v2150 = vld [vmem:[%s6 + $0x7c] sm:$0xf]
    %v2151 = vld [vmem:[%s7] sm:$0x1]
    %v2153 = vlaneseq
    %v2154 = vshrl.u32 %v2153, 7
    %v2155 = vsub.s32 0, %v2154
    %v2156 = vrot.slane %v2151, %v2155
    %v2190 = vunpack.c.l.b16 %v2119
    %v2191 = vunpack.c.l.b16 %v2120
    %v2192 = vunpack.c.l.b16 %v2121
    %v2193 = vunpack.c.l.b16 %v2122
    %v2194 = vunpack.c.l.b16 %v2123
    %v2195 = vunpack.c.l.b16 %v2124
    %v2196 = vunpack.c.l.b16 %v2125
    %v2197 = vunpack.c.l.b16 %v2126
    %v2198 = vunpack.c.l.b16 %v2127
    %v2199 = vunpack.c.l.b16 %v2128
    %v2200 = vunpack.c.l.b16 %v2129
    %v2201 = vunpack.c.l.b16 %v2130
    %v2202 = vunpack.c.l.b16 %v2131
    %v2203 = vunpack.c.l.b16 %v2132
    %v2204 = vunpack.c.l.b16 %v2133
    %v2205 = vunpack.c.l.b16 %v2134
    %v2206 = vunpack.c.l.b16 %v2135
    %v2207 = vunpack.c.l.b16 %v2136
    %v2208 = vunpack.c.l.b16 %v2137
    %v2209 = vunpack.c.l.b16 %v2138
    %v2210 = vunpack.c.l.b16 %v2139
    %v2211 = vunpack.c.l.b16 %v2140
    %v2212 = vunpack.c.l.b16 %v2141
    %v2213 = vunpack.c.l.b16 %v2142
    %v2214 = vunpack.c.l.b16 %v2143
    %v2215 = vunpack.c.l.b16 %v2144
    %v2216 = vunpack.c.l.b16 %v2145
    %v2217 = vunpack.c.l.b16 %v2146
    %v2218 = vunpack.c.l.b16 %v2147
    %v2219 = vunpack.c.l.b16 %v2148
    %v2220 = vunpack.c.l.b16 %v2149
    %v2221 = vunpack.c.l.b16 %v2150
    %v2222 = vpack.c.b16 %v2191, %v2190
    %v2223 = vpack.c.b16 %v2193, %v2192
    %v2224 = vpack.c.b16 %v2195, %v2194
    %v2225 = vpack.c.b16 %v2197, %v2196
    %v2226 = vpack.c.b16 %v2199, %v2198
    %v2227 = vpack.c.b16 %v2201, %v2200
    %v2228 = vpack.c.b16 %v2203, %v2202
    %v2229 = vpack.c.b16 %v2205, %v2204
    %v2230 = vpack.c.b16 %v2207, %v2206
    %v2231 = vpack.c.b16 %v2209, %v2208
    %v2232 = vpack.c.b16 %v2211, %v2210
    %v2233 = vpack.c.b16 %v2213, %v2212
    %v2234 = vpack.c.b16 %v2215, %v2214
    %v2235 = vpack.c.b16 %v2217, %v2216
    %v2236 = vpack.c.b16 %v2219, %v2218
    %v2237 = vpack.c.b16 %v2221, %v2220
    %2254 = vmatprep.subr.bf16.mxu0 0
    %2255 = vmatpush1.bf16.msra.mxu0 %v2222
    %2256 = vmatprep.subr.bf16.mxu0 0
    %2257 = vmatpush1.bf16.msra.mxu0 %v2223
    %2258 = vmatprep.subr.bf16.mxu0 0
    %2259 = vmatpush1.bf16.msra.mxu0 %v2224
    %2260 = vmatprep.subr.bf16.mxu0 0
    %2261 = vmatpush1.bf16.msra.mxu0 %v2225
    %2262 = vmatprep.subr.bf16.mxu0 0
    %2263 = vmatpush1.bf16.msra.mxu0 %v2226
    %2264 = vmatprep.subr.bf16.mxu0 0
    %2265 = vmatpush1.bf16.msra.mxu0 %v2227
    %2266 = vmatprep.subr.bf16.mxu0 0
    %2267 = vmatpush1.bf16.msra.mxu0 %v2228
    %2268 = vmatprep.subr.bf16.mxu0 0
    %2269 = vmatpush1.bf16.msra.mxu0 %v2229
    %2270 = vmatprep.subr.bf16.mxu0 0
    %2271 = vmatpush1.bf16.msra.mxu0 %v2230
    %2272 = vmatprep.subr.bf16.mxu0 0
    %2273 = vmatpush1.bf16.msra.mxu0 %v2231
    %2274 = vmatprep.subr.bf16.mxu0 0
    %2275 = vmatpush1.bf16.msra.mxu0 %v2232
    %2276 = vmatprep.subr.bf16.mxu0 0
    %2277 = vmatpush1.bf16.msra.mxu0 %v2233
    %2278 = vmatprep.subr.bf16.mxu0 0
    %2279 = vmatpush1.bf16.msra.mxu0 %v2234
    %2280 = vmatprep.subr.bf16.mxu0 0
    %2281 = vmatpush1.bf16.msra.mxu0 %v2235
    %2282 = vmatprep.subr.bf16.mxu0 0
    %2283 = vmatpush1.bf16.msra.mxu0 %v2236
    %2284 = vmatprep.subr.bf16.mxu0 0
    %2285 = vmatpush1.bf16.msra.mxu0 %v2237
    %2286 = vmatprep.mubr.bf16.mxu0 %v2118
    %2287 = vmatmul.mubr.bf16.gmra.mrb[0].mxu0 %v2117
    %v2288 = vpop.f32.mrb[0].mxu0
    %v2289 = vadd.f32 %v2156, %v2288
    %v2290 = vpop.f32.mrb[0].mxu0
    %v2291 = vpop.f32.mrb[0].mxu0
    %v2292 = vpop.f32.mrb[0].mxu0
    %2293 = vdwg.mxu0
    %v2296 = vunpack.c.l.s4 1966171168
    %v2297 = vunpack.c.0.s8 %v2296
    %v2298 = vlaneseq
    %v2299 = vshrl.u32 %v2298, 7
    %v2300 = vsub.s32 %v2297, %v2299
    %v2301 = vrot.slane %v2289, %v2300
    %v2302 = vcombine.high %v2301, %v2301
    %v2304 = vunpack.c.l.s4 1966171168
    %v2305 = vunpack.c.0.s8 %v2304
    %v2306 = vlaneseq
    %v2307 = vshrl.u32 %v2306, 7
    %v2308 = vsub.s32 %v2305, %v2307
    %v2309 = vrot.slane %v2301, %v2308
    %v2311 = vunpack.c.l.s4 1966171168
    %v2312 = vunpack.c.0.s8 %v2311
    %v2313 = vlaneseq
    %v2314 = vshrl.u32 %v2313, 7
    %v2315 = vsub.s32 %v2312, %v2314
    %v2316 = vrot.slane %v2302, %v2315
    %v2317 = vlaneseq
    %v2318 = vshrl.u32 %v2317, 7
    %v2319 = vsub.s32 0, %v2318
    %v2320 = vrot.slane %v2309, %v2319
    %v2321 = vlaneseq
    %v2322 = vshrl.u32 %v2321, 7
    %v2323 = vsub.s32 0, %v2322
    %v2324 = vrot.slane %v2316, %v2323
    %2327 = vst [vmem:[#allocation2] sm:$0xff] %v2320
    %2328 = vst [vmem:[#allocation2 + $0x8] sm:$0xff] %v2324
    %v2329 = vld [vmem:[%s1] sm:$0xff]
    %v2330 = vld [vmem:[%s1 + $0x8] sm:$0xff]
    %vm2331 = vcmask 1041408
    %v2332 = vsel %vm2331, %v2289, -inf
    %2333 = vmax.xlane.f32.xlu0 %v2332
    %v2334 = vpop.xlane.xlu0 %2333
    %v2335 = vsub.f32 %v2289, %v2334
    %v2336 = vmul.f32 %v2335, 1.442695
    %v2337 = vpow.pop %v2336
    %v2338 = vsel %vm2331, %v2337, 0.0
    %2339 = vadd.xlane.f32.xlu0 %v2338
    %v2340 = vpop.xlane.xlu0 %2339
    %v2341 = vlog2.pop %v2340
    %v2342 = vmul.f32 %v2341, 0.6931472
    %v2343 = vadd.f32 %v2342, %v2334
    %v2344 = vsub.f32 %v2289, %v2343
    %vm2345 = vcmp.ne.s32.totalorder %v2329, 0
    %vm2346 = vcmp.ne.s32.totalorder %v2330, 0
    %v2347 = vsel %vm2345, 1, 0
    %v2348 = vsel %vm2346, 1, 0
    %v2349 = vcvt.s32.f32 %v2347
    %v2350 = vcvt.s32.f32 %v2348
    %v2351 = vlaneseq
    %v2352 = vand.u32 %v2351, 127
    %2353 = vset.pattern.permute.xlu0 0
    %2354 = vperm.xlu0 %2353, %v2329
    %v2355 = vpop.permute.xlu0 %2354
    %2356 = vset.pattern.permute.xlu0 0
    %2357 = vperm.xlu0 %2356, %v2330
    %v2358 = vpop.permute.xlu0 %2357
    %vm2359 = vcmp.eq.s32.totalorder %v2352, %v2355
    %vm2360 = vcmp.eq.s32.totalorder %v2352, %v2358
    %2362 = vset.pattern.permute.xlu0 0
    %2363 = vperm.xlu0 %2362, %v2349
    %v2364 = vpop.permute.xlu0 %2363
    %2367 = vset.pattern.permute.xlu0 0
    %2368 = vperm.xlu0 %2367, %v2350
    %v2369 = vpop.permute.xlu0 %2368
    %v2371 = vsel %vm2359, %v2364, 0.0
    %v2372 = vsel %vm2360, %v2369, 0.0
    %v2373 = vrot.slane %v2371, 4
    %v2374 = vadd.f32 %v2371, %v2373
    %v2375 = vrot.slane %v2374, 2
    %v2376 = vadd.f32 %v2374, %v2375
    %v2377 = vrot.slane %v2376, 1
    %v2378 = vadd.f32 %v2376, %v2377
    %v2379 = vrot.slane %v2372, 4
    %v2380 = vadd.f32 %v2372, %v2379
    %v2381 = vrot.slane %v2380, 2
    %v2382 = vadd.f32 %v2380, %v2381
    %v2383 = vrot.slane %v2382, 1
    %v2384 = vadd.f32 %v2382, %v2383
    %v2387 = vsel %vm404, %v2384, %v2378
    %v2389 = vmul.f32 %v2344, %v2387
    %v2390 = vsel %vm2331, %v2389, 0.0
    %2391 = vadd.xlane.f32.xlu0 %v2390
    %v2392 = vpop.xlane.xlu0 %2391
    %v2393 = vrot.slane %v2392, 4
    %v2394 = vadd.f32 %v2392, %v2393
    %v2395 = vrot.slane %v2394, 2
    %v2396 = vadd.f32 %v2394, %v2395
    %v2397 = vrot.slane %v2396, 1
    %v2398 = vadd.f32 %v2396, %v2397
    %s2399 = vtos %v2398
    %vm2400 = vcmask 7168
    %v2401 = vsel %vm2400, %v2349, 0.0
    %v2402 = vsel %vm2400, %v2350, 0.0
    %v2403 = vadd.f32 %v2401, %v2402
    %2404 = vadd.xlane.f32.xlu0 %v2403
    %v2405 = vpop.xlane.xlu0 %2404
    %v2406 = vrot.slane %v2405, 4
    %v2407 = vadd.f32 %v2405, %v2406
    %v2408 = vrot.slane %v2407, 2
    %v2409 = vadd.f32 %v2407, %v2408
    %v2410 = vrot.slane %v2409, 1
    %v2411 = vadd.f32 %v2409, %v2410
    %s2412 = vtos %v2411
    %s2413 = smax.f32 %s2412, 1.0
    %s2414 = ssub.f32 0.0, %s2399
    %v2415 = vstv %s2413
    %v2416 = vrcp.pop %v2415
    %s2417 = vtos %v2416
    %s2418 = smul.f32 %s2414, %s2417
    %v2419 = vstv %s2418
    %vm2420 = vcmask 0
    %2421 = vst.msk [vmem:[#allocation4] sm:$0x1] %vm2420, %v2419
    // Predicated region
    $region34: #{summarize_forward.1} parent=1 // pred_check
      _
    $region35: #{summarize_forward.1} parent=1 // pred_check_branch
      %2423 = sbr.rel (0) target = $region37
    $region36: #{summarize_forward.1} parent=1 // pred_region
      %s2425 = ssub.s32 256, 256
      %2426 = vsyncadd [#allocation3], %s2425
      %s2427 = sshll.u32 [#allocation2], 4
      %s2428 = int_to_ptr.vmem [resolvable:$true] %s2427
      %2433 = dma.vmem_to_hbm [thread:$0]  %s2428, 256, %s8, [#allocation3], 128, 128, 8
    $region37: #{summarize_forward.1} parent=1 // pred_fallthru
      _
    // Predicated region
    $region38: #{summarize_forward.1} parent=1 // pred_check
      _
    $region39: #{summarize_forward.1} parent=1 // pred_check_branch
      %2435 = sbr.rel (0) target = $region41
    $region40: #{summarize_forward.1} parent=1 // pred_region
      %s2437 = ssub.s32 16, 16
      %2438 = vsyncadd [#allocation5], %s2437
      %s2440 = sshll.u32 [#allocation4], 4
      %s2441 = int_to_ptr.vmem [resolvable:$true] %s2440
      %2443 = dma.vmem_to_hbm [thread:$0]  %s2441, 16, %s9, [#allocation5]
    $region41: #{summarize_forward.1} parent=1 // pred_fallthru
      _
    // Predicated region
    $region42: #{summarize_forward.1} parent=1 // pred_check
      _
    $region43: #{summarize_forward.1} parent=1 // pred_check_branch
      %2445 = sbr.rel (0) target = $region45
    $region44: #{summarize_forward.1} parent=1 // pred_region
      %2446 = dma.done [#allocation3], 256
    $region45: #{summarize_forward.1} parent=1 // pred_fallthru
      _
    // Predicated region
    $region46: #{summarize_forward.1} parent=1 // pred_check
      _
    $region47: #{summarize_forward.1} parent=1 // pred_check_branch
      %2448 = sbr.rel (0) target = $region49
    $region48: #{summarize_forward.1} parent=1 // pred_region
      %2449 = dma.done [#allocation5], 16
    $region49: #{summarize_forward.1} parent=1 // pred_fallthru
      _
    %2450 = vsyncpa [#allocation3], 1
    %2451 = vsyncpa [#allocation5], 1

</llo_original>
